<compile_context>
chip_gen: v5e
topology: v5e:2x2
jax: 0.10.0
libtpu: 0.0.40
codegen_flags: <defaults>
</compile_context>

<pallas_src>
import functools

import jax
import jax.numpy as jnp
import numpy as np
from jax.experimental import pallas as pl
from jax.experimental.pallas import tpu as pltpu

BN_EPS = 1e-5
LANE = 128


# ---------------------------------------------------------------------------
# Pallas kernels
# ---------------------------------------------------------------------------
def _accumulate_step(a_ref, xk_ref, acc_ref, deg_ref):
    """One neighbor-tile step: A_tile @ X_tile into acc, row-degree into deg."""

    @pl.when(pl.program_id(1) == 0)
    def _():
        acc_ref[...] = jnp.zeros_like(acc_ref)
        deg_ref[...] = jnp.zeros_like(deg_ref)

    # int8 {0,1} adjacency streamed from HBM, upcast in VMEM; the MXU sees bf16.
    a32 = a_ref[...].astype(jnp.float32)
    acc_ref[...] += jnp.dot(a32.astype(jnp.bfloat16), xk_ref[...],
                            preferred_element_type=jnp.float32)
    # Fused degree (row sum of the raw adjacency tile) -- XLU slot, hides under
    # the A DMA / MXU work; removes the host-side f32 pre-pass over A entirely.
    deg_ref[...] += jnp.sum(a32, axis=-1, keepdims=True)


def _epilogue(acc_ref, deg_ref, xr_ref, wl_ref, wr_ref, b_ref):
    """Mean-normalize the aggregate and apply the two bf16 linear maps."""
    inv_deg = 1.0 / jnp.maximum(deg_ref[...], 1.0)        # mean aggregation
    agg = (acc_ref[...] * inv_deg).astype(jnp.bfloat16)
    return (jnp.dot(agg, wl_ref[...], preferred_element_type=jnp.float32)
            + jnp.dot(xr_ref[...], wr_ref[...], preferred_element_type=jnp.float32)
            + b_ref[...])


def sage_hidden_kernel(a_ref, xk_ref, xr_ref, wl_ref, wr_ref, b_ref,
                       o_ref, acc_ref, deg_ref):
    """One SAGEConv layer (mean aggr) + folded BatchNorm + ReLU."""
    _accumulate_step(a_ref, xk_ref, acc_ref, deg_ref)

    @pl.when(pl.program_id(1) == pl.num_programs(1) - 1)
    def _():
        h = _epilogue(acc_ref, deg_ref, xr_ref, wl_ref, wr_ref, b_ref)
        # BatchNorm already folded into wl/wr/b; dropout is identity in eval.
        o_ref[...] = jnp.maximum(h, 0.0).astype(o_ref.dtype)


def sage_out_kernel(a_ref, xk_ref, xr_ref, wl_ref, wr_ref, b_ref,
                    o_ref, acc_ref, deg_ref, *, num_classes):
    """Final SAGEConv + log_softmax over the real (un-padded) classes."""
    _accumulate_step(a_ref, xk_ref, acc_ref, deg_ref)

    @pl.when(pl.program_id(1) == pl.num_programs(1) - 1)
    def _():
        h = _epilogue(acc_ref, deg_ref, xr_ref, wl_ref, wr_ref, b_ref)
        # Masked, numerically-stable log_softmax (padded class lanes excluded).
        col = jax.lax.broadcasted_iota(jnp.int32, h.shape, 1)
        valid = col < num_classes
        h_m = jnp.where(valid, h, -1e30)
        m = jnp.max(h_m, axis=-1, keepdims=True)
        p = jnp.where(valid, jnp.exp(h_m - m), 0.0)
        lse = jnp.log(jnp.sum(p, axis=-1, keepdims=True))
        o_ref[...] = (h - m - lse).astype(o_ref.dtype)


# ---------------------------------------------------------------------------
# pallas_call wrapper for one conv layer
# ---------------------------------------------------------------------------
def _sage_conv_call(kernel_fn, a_pad, x_pad, wl, wr, b, out_dtype, tm, tk,
                    transcendental_per_elem=0):
    n_pad = a_pad.shape[0]
    fin_pad = x_pad.shape[1]
    fout_pad = wl.shape[1]
    assert n_pad % tm == 0 and n_pad % tk == 0, (n_pad, tm, tk)
    grid = (n_pad // tm, n_pad // tk)

    x_itm = x_pad.dtype.itemsize
    flops = 2 * n_pad * n_pad * fin_pad + 4 * n_pad * fin_pad * fout_pad
    bytes_acc = (a_pad.size * a_pad.dtype.itemsize               # A (int8), once
                 + grid[0] * n_pad * fin_pad * x_itm             # X_k re-read / row tile
                 + n_pad * fin_pad * x_itm                       # X_self, once
                 + (wl.size + wr.size) * wl.dtype.itemsize
                 + b.size * b.dtype.itemsize
                 + n_pad * fout_pad * np.dtype(out_dtype).itemsize)

    return pl.pallas_call(
        kernel_fn,
        out_shape=jax.ShapeDtypeStruct((n_pad, fout_pad), out_dtype),
        grid_spec=pltpu.PrefetchScalarGridSpec(
            num_scalar_prefetch=0,
            grid=grid,
            in_specs=[
                pl.BlockSpec((tm, tk), lambda i, k: (i, k)),             # A tile (int8)
                pl.BlockSpec((tk, fin_pad), lambda i, k: (k, 0)),        # X (neighbor rows)
                pl.BlockSpec((tm, fin_pad), lambda i, k: (i, 0)),        # X (self rows)
                pl.BlockSpec((fin_pad, fout_pad), lambda i, k: (0, 0)),  # W_l (BN-folded, bf16)
                pl.BlockSpec((fin_pad, fout_pad), lambda i, k: (0, 0)),  # W_r (BN-folded, bf16)
                pl.BlockSpec((1, fout_pad), lambda i, k: (0, 0)),        # bias (f32)
            ],
            out_specs=pl.BlockSpec((tm, fout_pad), lambda i, k: (i, 0)),
            scratch_shapes=[
                pltpu.VMEM((tm, fin_pad), jnp.float32),                  # aggregation acc
                pltpu.VMEM((tm, 1), jnp.float32),                        # fused row degree
            ],
        ),
        compiler_params=pltpu.CompilerParams(
            dimension_semantics=("parallel", "arbitrary"),
            # <= 48 MiB: safe on v7x's 64 MiB VMEM, explicit (mandatory) on v5e.
            vmem_limit_bytes=48 * 1024 * 1024,
        ),
        cost_estimate=pl.CostEstimate(
            flops=int(flops),
            transcendentals=int(transcendental_per_elem * n_pad * fout_pad),
            bytes_accessed=int(bytes_acc),
        ),
    )(a_pad, x_pad, x_pad, wl, wr, b)


# ---------------------------------------------------------------------------
# Host-side helpers (tiling, padding, BN folding)
# ---------------------------------------------------------------------------
def _round_up(v, m):
    return ((v + m - 1) // m) * m


def _choose_tiles(n, tm_max=512, tk_max=2048):
    """Power-of-two (x128) tiles that exactly divide the padded node count.

    Large tk amortizes the ~0.35us/step overhead and maximizes DMA size; large
    tm cuts the (N/TM)-fold re-streaming of the neighbor-feature block.  Both
    are clamped to the 128-rounded problem size so small graphs aren't blown up
    by padding, and tm is shrunk to keep >= 2 row tiles when possible so the
    "parallel" axis shards across v7x's two TensorCores.
    """
    n128 = _round_up(n, LANE)

    def pow2_tile(cap):
        t = LANE
        while t * 2 <= min(cap, n128):
            t *= 2
        return t

    tk = pow2_tile(tk_max)
    tm = pow2_tile(tm_max)
    n_pad = _round_up(n, max(tm, tk))        # both tiles are pow2*128 -> divide
    if n_pad // tm < 2 and tm > LANE:
        tm //= 2
    return tm, tk, n_pad


def _pad2d(x, rows, cols):
    r, c = x.shape
    if r == rows and c == cols:
        return x
    return jnp.pad(x, ((0, rows - r), (0, cols - c)))


def _fold_bn(layer):
    """Fold eval-mode BatchNorm1d into the SAGEConv weights/bias (f32)."""
    inv_std = 1.0 / jnp.sqrt(layer["run_var"] + BN_EPS)
    scale = layer["gamma"] * inv_std
    wl = layer["w_l"] * scale[None, :]
    wr = layer["w_r"] * scale[None, :]
    b = (layer["b"] - layer["run_mean"]) * scale + layer["beta"]
    return wl, wr, b


def _pad_weights(wl, wr, b):
    """Pad to 128-lane multiples; weights stored bf16, bias stays f32."""
    cin, cout = wl.shape
    cin_p, cout_p = _round_up(cin, LANE), _round_up(cout, LANE)
    return (_pad2d(wl, cin_p, cout_p).astype(jnp.bfloat16),
            _pad2d(wr, cin_p, cout_p).astype(jnp.bfloat16),
            _pad2d(b.reshape(1, -1), 1, cout_p).astype(jnp.float32))


# ---------------------------------------------------------------------------
# Model wrapper
# ---------------------------------------------------------------------------
def init_sage_params(key, in_channels, hidden_channels, out_channels, num_layers):
    dims = [in_channels] + [hidden_channels] * (num_layers - 1) + [out_channels]
    params = []
    for i in range(num_layers):
        cin, cout = dims[i], dims[i + 1]
        key, k1, k2, k3 = jax.random.split(key, 4)
        scale = 1.0 / jnp.sqrt(jnp.float32(cin))
        layer = {
            "w_l": jax.random.uniform(k1, (cin, cout), jnp.float32, -scale, scale),
            "w_r": jax.random.uniform(k2, (cin, cout), jnp.float32, -scale, scale),
            "b":   jax.random.uniform(k3, (cout,), jnp.float32, -scale, scale),
        }
        if i < num_layers - 1:  # hidden layers carry a BatchNorm1d
            key, k4, k5 = jax.random.split(key, 3)
            layer["gamma"] = 1.0 + 0.1 * jax.random.normal(k4, (cout,), jnp.float32)
            layer["beta"] = 0.1 * jax.random.normal(k5, (cout,), jnp.float32)
            layer["run_mean"] = jnp.zeros((cout,), jnp.float32)
            layer["run_var"] = jnp.ones((cout,), jnp.float32)
        params.append(layer)
    return params


def sage_forward(params, x, a_dense, *, tm_max=512, tk_max=2048):
    """Eval-mode SAGE forward.  a_dense is the raw (0/1) dense adjacency."""
    n, f_in = x.shape
    tm, tk, n_pad = _choose_tiles(n, tm_max=tm_max, tk_max=tk_max)

    # A streamed as int8 ({0,1} exact) -- half the bytes of a bf16 stream; the
    # in-kernel upcast to bf16 keeps the MXU path identical on v5e/v6e/v7x.
    a_pad = _pad2d(a_dense, n_pad, n_pad).astype(jnp.int8)
    # Features streamed bf16; f32 accumulation stays inside the kernel.
    x_pad = _pad2d(x, n_pad, _round_up(f_in, LANE)).astype(jnp.bfloat16)

    for layer in params[:-1]:
        wl, wr, b = _pad_weights(*_fold_bn(layer))
        # Hidden activations stay bf16 between layers (halves the X round-trip).
        x_pad = _sage_conv_call(sage_hidden_kernel, a_pad, x_pad,
                                wl, wr, b, jnp.bfloat16, tm, tk)
        # dropout: identity in eval mode

    last = params[-1]
    num_classes = last["w_l"].shape[1]
    wl, wr, b = _pad_weights(last["w_l"], last["w_r"], last["b"])
    kern = functools.partial(sage_out_kernel, num_classes=num_classes)
    out_pad = _sage_conv_call(kern, a_pad, x_pad, wl, wr, b,
                              jnp.float32, tm, tk, transcendental_per_elem=1)
    return out_pad[:n, :num_classes]


def sage_reference(params, x, a_dense):
    """Pure-JAX f32 reference of the same eval-mode forward."""
    deg = jnp.sum(a_dense, axis=-1, keepdims=True)
    a_norm = a_dense / jnp.maximum(deg, 1.0)
    h = x
    for layer in params[:-1]:
        z = (a_norm @ h) @ layer["w_l"] + h @ layer["w_r"] + layer["b"]
        z = ((z - layer["run_mean"]) * jax.lax.rsqrt(layer["run_var"] + BN_EPS)
             * layer["gamma"] + layer["beta"])
        h = jnp.maximum(z, 0.0)
    last = params[-1]
    z = (a_norm @ h) @ last["w_l"] + h @ last["w_r"] + last["b"]
    return jax.nn.log_softmax(z, axis=-1)


if __name__ == "__main__":
    key = jax.random.PRNGKey(0)
    N, IN_C, HID_C, OUT_C, NUM_LAYERS = 256, 48, 64, 10, 3

    key, kx, ka, kp = jax.random.split(key, 4)
    x = jax.random.normal(kx, (N, IN_C), jnp.float32)
    # Random sparse-ish symmetric adjacency with self-loops, dense representation.
    a = (jax.random.uniform(ka, (N, N)) < 0.05).astype(jnp.float32)
    a = jnp.maximum(a, a.T)
    a = jnp.maximum(a, jnp.eye(N, dtype=jnp.float32))

    params = init_sage_params(kp, IN_C, HID_C, OUT_C, NUM_LAYERS)

    out = jax.block_until_ready(sage_forward(params, x, a))
    ref = sage_reference(params, x, a)

    assert out.shape == (N, OUT_C)
    assert bool(jnp.all(jnp.isfinite(out)))
    # log_softmax rows must sum (in prob space) to 1
    assert bool(jnp.allclose(jnp.sum(jnp.exp(out), axis=-1), 1.0, atol=1e-4))
    # agree with the f32 reference up to bf16 streaming / bf16-weight error
    err = float(jnp.max(jnp.abs(out - ref)))
    assert err < 0.25, f"max |pallas - ref| = {err}"
    print("KERNEL_OK")
</pallas_src>

<mosaic_0001>
module attributes {stable_mosaic.version = 11 : i64} {
  func.func @sage_hidden_kernel(%arg0: i32, %arg1: i32, %arg2: memref<128x256xi8, #tpu.memory_space<vmem>>, %arg3: memref<256x128xbf16, #tpu.memory_space<vmem>>, %arg4: memref<128x128xbf16, #tpu.memory_space<vmem>>, %arg5: memref<128x128xbf16, #tpu.memory_space<vmem>>, %arg6: memref<128x128xbf16, #tpu.memory_space<vmem>>, %arg7: memref<1x128xf32, #tpu.memory_space<vmem>>, %arg8: memref<128x128xbf16, #tpu.memory_space<vmem>>, %arg9: memref<128x128xf32, #tpu.memory_space<vmem>>, %arg10: memref<128x1xf32, #tpu.memory_space<vmem>>) attributes {dimension_semantics = [#tpu.dimension_semantics<parallel>, #tpu.dimension_semantics<arbitrary>], iteration_bounds = array<i64: 2, 1>, scalar_prefetch = 0 : i64, scratch_operands = 2 : i64, tpu.core_type = #tpu.core_type<tc>, window_params = [{transform_indices = @transform_0, window_bounds = array<i64: 128, 256>}, {transform_indices = @transform_1, window_bounds = array<i64: 256, 128>}, {transform_indices = @transform_2, window_bounds = array<i64: 128, 128>}, {pipeline_mode = #tpu.pipeline_mode<synchronous>, transform_indices = @transform_3, window_bounds = array<i64: 128, 128>}, {pipeline_mode = #tpu.pipeline_mode<synchronous>, transform_indices = @transform_4, window_bounds = array<i64: 128, 128>}, {pipeline_mode = #tpu.pipeline_mode<synchronous>, transform_indices = @transform_5, window_bounds = array<i64: 1, 128>}, {transform_indices = @transform_6, window_bounds = array<i64: 128, 128>}]} {
    %c0_i32 = arith.constant 0 : i32
    %0 = arith.cmpi eq, %arg1, %c0_i32 : i32
    %1 = arith.extui %0 : i1 to i32
    %c0_i32_0 = arith.constant 0 : i32
    %2 = arith.cmpi ne, %1, %c0_i32_0 : i32
    scf.if %2 {
      %cst_15 = arith.constant 0.000000e+00 : f32
      %19 = vector.broadcast %cst_15 : f32 to vector<128x128xf32>
      %c0_16 = arith.constant 0 : index
      %c0_17 = arith.constant 0 : index
      %20 = vector.load %arg9[%c0_16, %c0_17] : memref<128x128xf32, #tpu.memory_space<vmem>>, vector<128x128xf32>
      tpu.vector_store %arg9[%c0_16, %c0_17], %19 {strides = array<i32>} : memref<128x128xf32, #tpu.memory_space<vmem>>, vector<128x128xf32>,
      %cst_18 = arith.constant 0.000000e+00 : f32
      %21 = vector.broadcast %cst_18 : f32 to vector<128x1xf32>
      %c0_19 = arith.constant 0 : index
      %c0_20 = arith.constant 0 : index
      %22 = vector.load %arg10[%c0_19, %c0_20] : memref<128x1xf32, #tpu.memory_space<vmem>>, vector<128x1xf32>
      tpu.vector_store %arg10[%c0_19, %c0_20], %21 {strides = array<i32>} : memref<128x1xf32, #tpu.memory_space<vmem>>, vector<128x1xf32>,
    } else {
    }
    %c0 = arith.constant 0 : index
    %c0_1 = arith.constant 0 : index
    %3 = vector.load %arg2[%c0, %c0_1] : memref<128x256xi8, #tpu.memory_space<vmem>>, vector<128x256xi8>
    %4 = arith.sitofp %3 : vector<128x256xi8> to vector<128x256xf32>
    %c0_2 = arith.constant 0 : index
    %c0_3 = arith.constant 0 : index
    %5 = vector.load %arg9[%c0_2, %c0_3] : memref<128x128xf32, #tpu.memory_space<vmem>>, vector<128x128xf32>
    %6 = arith.truncf %4 : vector<128x256xf32> to vector<128x256xbf16>
    %c0_4 = arith.constant 0 : index
    %c0_5 = arith.constant 0 : index
    %7 = vector.load %arg3[%c0_4, %c0_5] : memref<256x128xbf16, #tpu.memory_space<vmem>>, vector<256x128xbf16>
    %cst = arith.constant dense<0.000000e+00> : vector<128x128xf32>
    %8 = tpu.matmul %6, %7, %cst {dimension_numbers = #tpu.dot_dimension_numbers<[1], [0], [0], [1], [0, 0, 1, 1], [], []>} : vector<128x256xbf16>, vector<256x128xbf16>, vector<128x128xf32> -> vector<128x128xf32>
    %9 = arith.addf %5, %8 : vector<128x128xf32>
    %c0_6 = arith.constant 0 : index
    %c0_7 = arith.constant 0 : index
    %10 = vector.load %arg9[%c0_6, %c0_7] : memref<128x128xf32, #tpu.memory_space<vmem>>, vector<128x128xf32>
    tpu.vector_store %arg9[%c0_6, %c0_7], %9 {strides = array<i32>} : memref<128x128xf32, #tpu.memory_space<vmem>>, vector<128x128xf32>,
    %c0_8 = arith.constant 0 : index
    %c0_9 = arith.constant 0 : index
    %11 = vector.load %arg10[%c0_8, %c0_9] : memref<128x1xf32, #tpu.memory_space<vmem>>, vector<128x1xf32>
    %cst_10 = arith.constant dense<0.000000e+00> : vector<128xf32>
    %12 = vector.multi_reduction <add>, %4, %cst_10 [1] : vector<128x256xf32> to vector<128xf32>
    %13 = vector.shape_cast %12 : vector<128xf32> to vector<128x1xf32>
    %14 = arith.addf %11, %13 : vector<128x1xf32>
    %c0_11 = arith.constant 0 : index
    %c0_12 = arith.constant 0 : index
    %15 = vector.load %arg10[%c0_11, %c0_12] : memref<128x1xf32, #tpu.memory_space<vmem>>, vector<128x1xf32>
    tpu.vector_store %arg10[%c0_11, %c0_12], %14 {strides = array<i32>} : memref<128x1xf32, #tpu.memory_space<vmem>>, vector<128x1xf32>,
    %c0_i32_13 = arith.constant 0 : i32
    %16 = arith.cmpi eq, %arg1, %c0_i32_13 : i32
    %17 = arith.extui %16 : i1 to i32
    %c0_i32_14 = arith.constant 0 : i32
    %18 = arith.cmpi ne, %17, %c0_i32_14 : i32
    scf.if %18 {
      %c0_15 = arith.constant 0 : index
      %c0_16 = arith.constant 0 : index
      %19 = vector.load %arg10[%c0_15, %c0_16] : memref<128x1xf32, #tpu.memory_space<vmem>>, vector<128x1xf32>
      %cst_17 = arith.constant 1.000000e+00 : f32
      %20 = vector.broadcast %cst_17 : f32 to vector<128x1xf32>
      %21 = arith.maximumf %19, %20 : vector<128x1xf32>
      %cst_18 = arith.constant 1.000000e+00 : f32
      %22 = vector.broadcast %cst_18 : f32 to vector<128x1xf32>
      %23 = arith.divf %22, %21 : vector<128x1xf32>
      %c0_19 = arith.constant 0 : index
      %c0_20 = arith.constant 0 : index
      %24 = vector.load %arg9[%c0_19, %c0_20] : memref<128x128xf32, #tpu.memory_space<vmem>>, vector<128x128xf32>
      %25 = vector.broadcast %23 : vector<128x1xf32> to vector<128x128xf32>
      %26 = arith.mulf %24, %25 : vector<128x128xf32>
      %27 = arith.truncf %26 : vector<128x128xf32> to vector<128x128xbf16>
      %c0_21 = arith.constant 0 : index
      %c0_22 = arith.constant 0 : index
      %28 = vector.load %arg5[%c0_21, %c0_22] : memref<128x128xbf16, #tpu.memory_space<vmem>>, vector<128x128xbf16>
      %cst_23 = arith.constant dense<0.000000e+00> : vector<128x128xf32>
      %29 = tpu.matmul %27, %28, %cst_23 {dimension_numbers = #tpu.dot_dimension_numbers<[1], [0], [0], [1], [0, 0, 1, 1], [], []>} : vector<128x128xbf16>, vector<128x128xbf16>, vector<128x128xf32> -> vector<128x128xf32>
      %c0_24 = arith.constant 0 : index
      %c0_25 = arith.constant 0 : index
      %30 = vector.load %arg4[%c0_24, %c0_25] : memref<128x128xbf16, #tpu.memory_space<vmem>>, vector<128x128xbf16>
      %c0_26 = arith.constant 0 : index
      %c0_27 = arith.constant 0 : index
      %31 = vector.load %arg6[%c0_26, %c0_27] : memref<128x128xbf16, #tpu.memory_space<vmem>>, vector<128x128xbf16>
      %cst_28 = arith.constant dense<0.000000e+00> : vector<128x128xf32>
      %32 = tpu.matmul %30, %31, %cst_28 {dimension_numbers = #tpu.dot_dimension_numbers<[1], [0], [0], [1], [0, 0, 1, 1], [], []>} : vector<128x128xbf16>, vector<128x128xbf16>, vector<128x128xf32> -> vector<128x128xf32>
      %33 = arith.addf %29, %32 : vector<128x128xf32>
      %c0_29 = arith.constant 0 : index
      %c0_30 = arith.constant 0 : index
      %34 = vector.load %arg7[%c0_29, %c0_30] : memref<1x128xf32, #tpu.memory_space<vmem>>, vector<1x128xf32>
      %35 = vector.broadcast %34 : vector<1x128xf32> to vector<128x128xf32>
      %36 = arith.addf %33, %35 : vector<128x128xf32>
      %cst_31 = arith.constant 0.000000e+00 : f32
      %37 = vector.broadcast %cst_31 : f32 to vector<128x128xf32>
      %38 = arith.maximumf %36, %37 : vector<128x128xf32>
      %39 = arith.truncf %38 : vector<128x128xf32> to vector<128x128xbf16>
      %c0_32 = arith.constant 0 : index
      %c0_33 = arith.constant 0 : index
      %40 = vector.load %arg8[%c0_32, %c0_33] : memref<128x128xbf16, #tpu.memory_space<vmem>>, vector<128x128xbf16>
      tpu.vector_store %arg8[%c0_32, %c0_33], %39 {strides = array<i32>} : memref<128x128xbf16, #tpu.memory_space<vmem>>, vector<128x128xbf16>,
    } else {
    }
    return
  }
  func.func @transform_0(%arg0: i32, %arg1: i32) -> (i32, i32) {
    %c0_i32 = arith.constant 0 : i32
    return %arg0, %arg1 : i32, i32
  }
  func.func @transform_1(%arg0: i32, %arg1: i32) -> (i32, i32) {
    %c0_i32 = arith.constant 0 : i32
    %c0_i32_0 = arith.constant 0 : i32
    return %arg1, %c0_i32 : i32, i32
  }
  func.func @transform_2(%arg0: i32, %arg1: i32) -> (i32, i32) {
    %c0_i32 = arith.constant 0 : i32
    %c0_i32_0 = arith.constant 0 : i32
    return %arg0, %c0_i32 : i32, i32
  }
  func.func @transform_3(%arg0: i32, %arg1: i32) -> (i32, i32) {
    %c0_i32 = arith.constant 0 : i32
    %c0_i32_0 = arith.constant 0 : i32
    %c0_i32_1 = arith.constant 0 : i32
    return %c0_i32, %c0_i32_0 : i32, i32
  }
  func.func @transform_4(%arg0: i32, %arg1: i32) -> (i32, i32) {
    %c0_i32 = arith.constant 0 : i32
    %c0_i32_0 = arith.constant 0 : i32
    %c0_i32_1 = arith.constant 0 : i32
    return %c0_i32, %c0_i32_0 : i32, i32
  }
  func.func @transform_5(%arg0: i32, %arg1: i32) -> (i32, i32) {
    %c0_i32 = arith.constant 0 : i32
    %c0_i32_0 = arith.constant 0 : i32
    %c0_i32_1 = arith.constant 0 : i32
    return %c0_i32, %c0_i32_0 : i32, i32
  }
  func.func @transform_6(%arg0: i32, %arg1: i32) -> (i32, i32) {
    %c0_i32 = arith.constant 0 : i32
    %c0_i32_0 = arith.constant 0 : i32
    return %arg0, %c0_i32 : i32, i32
  }
}

</mosaic_0001>

<llo_original>
// kernel: tpu_custom_call.1
$region0: #{tpu_custom_call.1}
  #allocation0 [shape = 'u32[]', space=smem, size = 0x4, offset = 0x4, fixed_abs, tag = 'smem constant byte address 0x4 - core index']
  #allocation1 [shape = 'u32[72,128]{1,0:T(1,128)}', space=vmem, size = 0x9000, scoped, tag = 'internal scratch']
  #allocation2 [shape = 'f32[128,128]{1,0:T(8,128)}', space=vmem, size = 0x10000, scoped, tag = 'scratch operand']
  #allocation3 [shape = 'f32[128,1]{1,0:T(8,128)}', space=vmem, size = 0x10000, scoped, tag = 'scratch operand']
  %s0 = inlined_call_operand.hbm [shape: s8[256,256], index: 0, kind: input, shape index: {}]
  %s1 = inlined_call_operand.hbm [shape: bf16[256,128], index: 1, kind: input, shape index: {}]
  %s2 = inlined_call_operand.hbm [shape: bf16[256,128], index: 2, kind: input, shape index: {}]
  %s3 = inlined_call_operand.hbm [shape: bf16[128,128], index: 3, kind: input, shape index: {}]
  %s4 = inlined_call_operand.hbm [shape: bf16[128,128], index: 4, kind: input, shape index: {}]
  %s5 = inlined_call_operand.vmem [shape: f32[1,128], index: 5, kind: input, shape index: {}]
  %s6 = inlined_call_operand.hbm [shape: bf16[256,128], index: 6, kind: output, shape index: {}]
  %s7 = sld [smem:[#allocation0]]
  $region85: #{tpu_custom_call.1} parent=0
    _
  %s9 = ssub.s32 1, %s7
  %s10 = scalar_select 0, %s9, %s7
  $region1: #{tpu_custom_call.1} parent=0
    #allocation4 [shape = 'u8[65536]{0}', space=vmem, size = 0x10000, scoped, tag = 'input window, operand 0']
    #allocation5 [shape = 's32[2]{0}', space=sflag, size = 0x8, scoped, tag = 'scoped memory for tpu_custom_call.1']
    #allocation6 [shape = 's32[2]{0}', space=sflag, size = 0x8, scoped, tag = 'scoped memory for tpu_custom_call.1']
    #allocation7 [shape = 'u8[65536]{0}', space=vmem, size = 0x10000, scoped, tag = 'input window, operand 1, single buffered']
    #allocation8 [shape = 's32[1]{0}', space=sflag, size = 0x4, scoped, tag = 'scoped memory for tpu_custom_call.1']
    #allocation9 [shape = 'u8[65536]{0}', space=vmem, size = 0x10000, scoped, tag = 'input window, operand 2']
    #allocation10 [shape = 'u8[32768]{0}', space=vmem, size = 0x8000, scoped, tag = 'input window, operand 3, single buffered']
    #allocation11 [shape = 'u8[32768]{0}', space=vmem, size = 0x8000, scoped, tag = 'input window, operand 4, single buffered']
    #allocation12 [shape = 's32[1]{0}', space=sflag, size = 0x4, scoped, tag = 'scoped memory for tpu_custom_call.1']
    #allocation13 [shape = 'u8[65536]{0}', space=vmem, size = 0x10000, scoped, tag = 'output window, operand 0']
    %11 = vsyncpa [#allocation5], 0
    %s12 = scalar_lea.sflag [#allocation5], 1
    %13 = vsyncpa %s12, 0
    %14 = vsyncpa [#allocation8], 0
    %15 = vsyncpa [#allocation12], 0
    %16 = vsyncpa [#allocation6], 0
    %s17 = scalar_lea.sflag [#allocation6], 1
    %18 = vsyncpa %s17, 0
    loop: start=0, step=1, limit=4
    $region2: #{tpu_custom_call.1} parent=1 // loop_pre_header
      _
    $region3: #{tpu_custom_call.1} parent=1 // loop_header
      %s20 = sphi 0, %s24
      %p21 = scmp.ge.s32.totalorder %s20, 4
      %s27 = sphi 0, %s39
      %s28 = sphi 0, %s35
      %s29 = sphi 0, %s27
      %s30 = sphi 0, %s28
      %s31 = sphi 0, %s29
      %s32 = sphi 0, %s30
      %s44 = sphi 0, %s46
      %s47 = sphi 0, %s44
      %s48 = sphi 0, %s47
      %s64 = sphi 0, %s48
      %s70 = sphi 0, %s72
      %s73 = sphi 0, %s70
      %s74 = sphi 0, %s73
      %s90 = sphi 0, %s74
      %s96 = sphi 0, %s98
      %s99 = sphi 0, %s96
      %s100 = sphi 0, %s99
      %s116 = sphi 0, %s100
      %s120 = sphi 0, %s120
      %s122 = sphi 0, %s120
      %s123 = sphi 0, %s122
      %s137 = sphi 0, %s123
      %s141 = sphi 0, %s141
      %s143 = sphi 0, %s141
      %s144 = sphi 0, %s143
      %s158 = sphi 0, %s144
      %s162 = sphi 0, %s162
      %s164 = sphi 0, %s162
      %s165 = sphi 0, %s164
      %s179 = sphi 0, %s165
      %s185 = sphi 0, %s187
      %s188 = sphi 0, %s185
      %s189 = sphi 0, %s188
      %s205 = sphi 0, %s189
    $region4: #{tpu_custom_call.1} parent=1 // loop_header_branch
      %23 = sbr.rel (%p21) target = $region8
    $region5: #{tpu_custom_call.1} parent=1 // loop_body
      %s25 = ssub.s32 %s20, 1
      %s26 = ssub.s32 %s20, 2
      %s33 = sadd.s32 1, %s28
      %p34 = scmp.ge.s32.totalorder %s33, 1
      %s35 = scalar_select %p34, 0, %s33
      %s36 = sadd.s32 1, %s27
      %s37 = scalar_select %p34, %s36, %s27
      %p38 = scmp.ge.s32.totalorder %s37, 2
      %s39 = scalar_select %p38, 0, %s37
      %s40 = ssub.s32 %s27, %s39
      %s41 = ssub.s32 %s28, %s35
      %s42 = sor.u32 %s40, %s41
      %p43 = scmp.eq.s32.totalorder %s42, 0
      %s45 = sadd.s32 %s44, 1
      %s46 = scalar_select %p43, %s44, %s45
      %p49 = pneg %p43
      %p50 = scmp.eq.s32.totalorder %s20, 1
      %p51 = por %p49, %p50
      %p52 = scmp.ne.s32.totalorder %s44, %s47
      %p53 = scmp.eq.s32.totalorder %s20, 0
      %p54 = por %p52, %p53
      %p55 = scmp.ne.s32.totalorder %s44, %s47
      %p56 = scmp.eq.s32.totalorder %s25, 1
      %p57 = por %p55, %p56
      %p58 = scmp.ne.s32.totalorder %s47, %s48
      %p59 = scmp.eq.s32.totalorder %s25, 0
      %p60 = por %p58, %p59
      %p61 = scmp.ne.s32.totalorder %s47, %s48
      %p62 = scmp.eq.s32.totalorder %s26, 1
      %p63 = por %p61, %p62
      %p65 = scmp.ne.s32.totalorder %s48, %s64
      %p66 = scmp.eq.s32.totalorder %s26, 0
      %p67 = por %p65, %p66
      %s68 = ssub.s32 %s28, %s35
      %p69 = scmp.eq.s32.totalorder %s68, 0
      %s71 = sadd.s32 %s70, 1
      %s72 = scalar_select %p69, %s70, %s71
      %p75 = pneg %p69
      %p76 = scmp.eq.s32.totalorder %s20, 1
      %p77 = por %p75, %p76
      %p78 = scmp.ne.s32.totalorder %s70, %s73
      %p79 = scmp.eq.s32.totalorder %s20, 0
      %p80 = por %p78, %p79
      %p81 = scmp.ne.s32.totalorder %s70, %s73
      %p82 = scmp.eq.s32.totalorder %s25, 1
      %p83 = por %p81, %p82
      %p84 = scmp.ne.s32.totalorder %s73, %s74
      %p85 = scmp.eq.s32.totalorder %s25, 0
      %p86 = por %p84, %p85
      %p87 = scmp.ne.s32.totalorder %s73, %s74
      %p88 = scmp.eq.s32.totalorder %s26, 1
      %p89 = por %p87, %p88
      %p91 = scmp.ne.s32.totalorder %s74, %s90
      %p92 = scmp.eq.s32.totalorder %s26, 0
      %p93 = por %p91, %p92
      %s94 = ssub.s32 %s27, %s39
      %p95 = scmp.eq.s32.totalorder %s94, 0
      %s97 = sadd.s32 %s96, 1
      %s98 = scalar_select %p95, %s96, %s97
      %p101 = pneg %p95
      %p102 = scmp.eq.s32.totalorder %s20, 1
      %p103 = por %p101, %p102
      %p104 = scmp.ne.s32.totalorder %s96, %s99
      %p105 = scmp.eq.s32.totalorder %s20, 0
      %p106 = por %p104, %p105
      %p107 = scmp.ne.s32.totalorder %s96, %s99
      %p108 = scmp.eq.s32.totalorder %s25, 1
      %p109 = por %p107, %p108
      %p110 = scmp.ne.s32.totalorder %s99, %s100
      %p111 = scmp.eq.s32.totalorder %s25, 0
      %p112 = por %p110, %p111
      %p113 = scmp.ne.s32.totalorder %s99, %s100
      %p114 = scmp.eq.s32.totalorder %s26, 1
      %p115 = por %p113, %p114
      %p117 = scmp.ne.s32.totalorder %s100, %s116
      %p118 = scmp.eq.s32.totalorder %s26, 0
      %p119 = por %p117, %p118
      %s121 = sadd.s32 %s120, 1
      %p124 = scmp.eq.s32.totalorder %s20, 1
      %p125 = scmp.ne.s32.totalorder %s120, %s122
      %p126 = scmp.eq.s32.totalorder %s20, 0
      %p127 = por %p125, %p126
      %p128 = scmp.ne.s32.totalorder %s120, %s122
      %p129 = scmp.eq.s32.totalorder %s25, 1
      %p130 = por %p128, %p129
      %p131 = scmp.ne.s32.totalorder %s122, %s123
      %p132 = scmp.eq.s32.totalorder %s25, 0
      %p133 = por %p131, %p132
      %p134 = scmp.ne.s32.totalorder %s122, %s123
      %p135 = scmp.eq.s32.totalorder %s26, 1
      %p136 = por %p134, %p135
      %p138 = scmp.ne.s32.totalorder %s123, %s137
      %p139 = scmp.eq.s32.totalorder %s26, 0
      %p140 = por %p138, %p139
      %s142 = sadd.s32 %s141, 1
      %p145 = scmp.eq.s32.totalorder %s20, 1
      %p146 = scmp.ne.s32.totalorder %s141, %s143
      %p147 = scmp.eq.s32.totalorder %s20, 0
      %p148 = por %p146, %p147
      %p149 = scmp.ne.s32.totalorder %s141, %s143
      %p150 = scmp.eq.s32.totalorder %s25, 1
      %p151 = por %p149, %p150
      %p152 = scmp.ne.s32.totalorder %s143, %s144
      %p153 = scmp.eq.s32.totalorder %s25, 0
      %p154 = por %p152, %p153
      %p155 = scmp.ne.s32.totalorder %s143, %s144
      %p156 = scmp.eq.s32.totalorder %s26, 1
      %p157 = por %p155, %p156
      %p159 = scmp.ne.s32.totalorder %s144, %s158
      %p160 = scmp.eq.s32.totalorder %s26, 0
      %p161 = por %p159, %p160
      %s163 = sadd.s32 %s162, 1
      %p166 = scmp.eq.s32.totalorder %s20, 1
      %p167 = scmp.ne.s32.totalorder %s162, %s164
      %p168 = scmp.eq.s32.totalorder %s20, 0
      %p169 = por %p167, %p168
      %p170 = scmp.ne.s32.totalorder %s162, %s164
      %p171 = scmp.eq.s32.totalorder %s25, 1
      %p172 = por %p170, %p171
      %p173 = scmp.ne.s32.totalorder %s164, %s165
      %p174 = scmp.eq.s32.totalorder %s25, 0
      %p175 = por %p173, %p174
      %p176 = scmp.ne.s32.totalorder %s164, %s165
      %p177 = scmp.eq.s32.totalorder %s26, 1
      %p178 = por %p176, %p177
      %p180 = scmp.ne.s32.totalorder %s165, %s179
      %p181 = scmp.eq.s32.totalorder %s26, 0
      %p182 = por %p180, %p181
      %s183 = ssub.s32 %s27, %s39
      %p184 = scmp.eq.s32.totalorder %s183, 0
      %s186 = sadd.s32 %s185, 1
      %s187 = scalar_select %p184, %s185, %s186
      %p190 = pneg %p184
      %p191 = scmp.eq.s32.totalorder %s20, 1
      %p192 = por %p190, %p191
      %p193 = scmp.ne.s32.totalorder %s185, %s188
      %p194 = scmp.eq.s32.totalorder %s20, 0
      %p195 = por %p193, %p194
      %p196 = scmp.ne.s32.totalorder %s185, %s188
      %p197 = scmp.eq.s32.totalorder %s25, 1
      %p198 = por %p196, %p197
      %p199 = scmp.ne.s32.totalorder %s188, %s189
      %p200 = scmp.eq.s32.totalorder %s25, 0
      %p201 = por %p199, %p200
      %p202 = scmp.ne.s32.totalorder %s188, %s189
      %p203 = scmp.eq.s32.totalorder %s26, 1
      %p204 = por %p202, %p203
      %p206 = scmp.ne.s32.totalorder %s189, %s205
      %p207 = scmp.eq.s32.totalorder %s26, 0
      %p208 = por %p206, %p207
      %p209 = scmp.le.s32.totalorder 1, %s20
      %p210 = scmp.lt.s32.totalorder %s20, 3
      %p211 = pnand %p209, %p210
      %p212 = pneg %p211
      // Predicated region
      $region9: #{tpu_custom_call.1} parent=5 // pred_check
        _
      $region10: #{tpu_custom_call.1} parent=5 // pred_check_branch
        %214 = sbr.rel (%p211) target = $region12
      $region11: #{tpu_custom_call.1} parent=5 // pred_region
        %s215 = ssub.s32 %s20, 1
        // Predicated region
        $region13: #{tpu_custom_call.1} parent=11 // pred_check
          %p216 = pneg %p86
        $region14: #{tpu_custom_call.1} parent=11 // pred_check_branch
          %218 = sbr.rel (%p216) target = $region16
        $region15: #{tpu_custom_call.1} parent=11 // pred_region
          %s219 = smul.u32 32, %s30
          %221 = vsyncadd [#allocation8], 0
          %s222 = smul.addr %s219, 4
          %s223 = scalar_lea.hbm %s1, %s222
          %s224 = sshll.u32 %s223, 4
          %s225 = int_to_ptr.hbm [resolvable:$true] %s224
          %s226 = sshll.u32 [#allocation7], 4
          %s227 = int_to_ptr.vmem [resolvable:$true] %s226
          %232 = dma.hbm_to_vmem [thread:$0]  %s225, 2048, %s227, [#allocation8], 64, 64, 4
        $region16: #{tpu_custom_call.1} parent=11 // pred_fallthru
          _
        // Predicated region
        $region17: #{tpu_custom_call.1} parent=11 // pred_check
          %p233 = pneg %p133
        $region18: #{tpu_custom_call.1} parent=11 // pred_check_branch
          %235 = sbr.rel (%p233) target = $region20
        $region19: #{tpu_custom_call.1} parent=11 // pred_region
          %237 = vsyncadd [#allocation8], 0
          %s238 = sshll.u32 %s3, 4
          %s239 = int_to_ptr.hbm [resolvable:$true] %s238
          %s240 = sshll.u32 [#allocation10], 4
          %s241 = int_to_ptr.vmem [resolvable:$true] %s240
          %246 = dma.hbm_to_vmem [thread:$0]  %s239, 1024, %s241, [#allocation8], 64, 64, 4
        $region20: #{tpu_custom_call.1} parent=11 // pred_fallthru
          _
        // Predicated region
        $region21: #{tpu_custom_call.1} parent=11 // pred_check
          %p247 = pneg %p154
        $region22: #{tpu_custom_call.1} parent=11 // pred_check_branch
          %249 = sbr.rel (%p247) target = $region24
        $region23: #{tpu_custom_call.1} parent=11 // pred_region
          %251 = vsyncadd [#allocation12], 0
          %s252 = sshll.u32 %s4, 4
          %s253 = int_to_ptr.hbm [resolvable:$true] %s252
          %s254 = sshll.u32 [#allocation11], 4
          %s255 = int_to_ptr.vmem [resolvable:$true] %s254
          %260 = dma.hbm_to_vmem [thread:$0]  %s253, 1024, %s255, [#allocation12], 64, 64, 4
        $region24: #{tpu_custom_call.1} parent=11 // pred_fallthru
          _
        // Predicated region
        $region25: #{tpu_custom_call.1} parent=11 // pred_check
          %p261 = pneg %p175
        $region26: #{tpu_custom_call.1} parent=11 // pred_check_branch
          %263 = sbr.rel (%p261) target = $region28
        $region27: #{tpu_custom_call.1} parent=11 // pred_region
          _
        $region28: #{tpu_custom_call.1} parent=11 // pred_fallthru
          _
      $region12: #{tpu_custom_call.1} parent=5 // pred_fallthru
        _
      %p264 = scmp.lt.s32.totalorder %s20, 2
      // Predicated region
      $region29: #{tpu_custom_call.1} parent=5 // pred_check
        %p265 = pneg %p264
      $region30: #{tpu_custom_call.1} parent=5 // pred_check_branch
        %267 = sbr.rel (%p265) target = $region32
      $region31: #{tpu_custom_call.1} parent=5 // pred_region
        // Predicated region
        $region33: #{tpu_custom_call.1} parent=31 // pred_check
          %p268 = pneg %p54
        $region34: #{tpu_custom_call.1} parent=31 // pred_check_branch
          %270 = sbr.rel (%p268) target = $region36
        $region35: #{tpu_custom_call.1} parent=31 // pred_region
          %s271 = sand.u32 %s20, 1
          %s272 = scalar_lea.sflag [#allocation5], %s271
          %s273 = sand.u32 %s44, 1
          %s274 = smul.addr %s273, 64
          %s275 = scalar_lea.vmem [#allocation4], %s274
          %s276 = smul.u32 4, %s27
          %s277 = smul.u32 2, %s28
          %279 = vsyncadd %s272, 0
          %s280 = smul.addr %s276, 2
          %s281 = sadd.s32 %s277, %s280
          %s282 = smul.addr %s281, 8
          %s283 = scalar_lea.hbm %s0, %s282
          %s284 = sshll.u32 %s283, 4
          %s285 = int_to_ptr.hbm [resolvable:$true] %s284
          %s286 = sshll.u32 %s275, 4
          %s287 = int_to_ptr.vmem [resolvable:$true] %s286
          %292 = dma.hbm_to_vmem [thread:$0]  %s285, 1024, %s287, %s272, 256, 256, 16
        $region36: #{tpu_custom_call.1} parent=31 // pred_fallthru
          _
        // Predicated region
        $region37: #{tpu_custom_call.1} parent=31 // pred_check
          %p293 = pneg %p106
        $region38: #{tpu_custom_call.1} parent=31 // pred_check_branch
          %295 = sbr.rel (%p293) target = $region40
        $region39: #{tpu_custom_call.1} parent=31 // pred_region
          %s296 = sand.u32 %s20, 1
          %s297 = scalar_lea.sflag [#allocation5], %s296
          %s298 = sand.u32 %s96, 1
          %s299 = smul.addr %s298, 64
          %s300 = scalar_lea.vmem [#allocation9], %s299
          %s301 = smul.u32 16, %s27
          %303 = vsyncadd %s297, 0
          %s304 = smul.addr %s301, 4
          %s305 = scalar_lea.hbm %s2, %s304
          %s306 = sshll.u32 %s305, 4
          %s307 = int_to_ptr.hbm [resolvable:$true] %s306
          %s308 = sshll.u32 %s300, 4
          %s309 = int_to_ptr.vmem [resolvable:$true] %s308
          %314 = dma.hbm_to_vmem [thread:$0]  %s307, 1024, %s309, %s297, 64, 64, 4
        $region40: #{tpu_custom_call.1} parent=31 // pred_fallthru
          _
      $region32: #{tpu_custom_call.1} parent=5 // pred_fallthru
        _
      %p315 = scmp.le.s32.totalorder 1, %s20
      %p316 = scmp.lt.s32.totalorder %s20, 3
      %p317 = pnand %p315, %p316
      %p318 = pneg %p317
      // Predicated region
      $region41: #{tpu_custom_call.1} parent=5 // pred_check
        _
      $region42: #{tpu_custom_call.1} parent=5 // pred_check_branch
        %320 = sbr.rel (%p317) target = $region44
      $region43: #{tpu_custom_call.1} parent=5 // pred_region
        %s321 = ssub.s32 %s20, 1
        %s322 = sand.u32 %s25, 1
        %s323 = scalar_lea.sflag [#allocation5], %s322
        %s324 = sand.u32 %s47, 1
        %s325 = smul.addr %s324, 64
        %s326 = scalar_lea.vmem [#allocation4], %s325
        // Predicated region
        $region45: #{tpu_custom_call.1} parent=43 // pred_check
          %p327 = pneg %p60
        $region46: #{tpu_custom_call.1} parent=43 // pred_check_branch
          %329 = sbr.rel (%p327) target = $region48
        $region47: #{tpu_custom_call.1} parent=43 // pred_region
          %331 = dma.done %s323, 1024
        $region48: #{tpu_custom_call.1} parent=43 // pred_fallthru
          _
        // Predicated region
        $region49: #{tpu_custom_call.1} parent=43 // pred_check
          %p332 = pneg %p86
        $region50: #{tpu_custom_call.1} parent=43 // pred_check_branch
          %334 = sbr.rel (%p332) target = $region52
        $region51: #{tpu_custom_call.1} parent=43 // pred_region
          %336 = dma.done [#allocation8], 2048
        $region52: #{tpu_custom_call.1} parent=43 // pred_fallthru
          _
        %s337 = sand.u32 %s25, 1
        %s338 = scalar_lea.sflag [#allocation5], %s337
        %s339 = sand.u32 %s99, 1
        %s340 = smul.addr %s339, 64
        %s341 = scalar_lea.vmem [#allocation9], %s340
        // Predicated region
        $region53: #{tpu_custom_call.1} parent=43 // pred_check
          %p342 = pneg %p112
        $region54: #{tpu_custom_call.1} parent=43 // pred_check_branch
          %344 = sbr.rel (%p342) target = $region56
        $region55: #{tpu_custom_call.1} parent=43 // pred_region
          %346 = dma.done %s338, 1024
        $region56: #{tpu_custom_call.1} parent=43 // pred_fallthru
          _
        // Predicated region
        $region57: #{tpu_custom_call.1} parent=43 // pred_check
          %p347 = pneg %p133
        $region58: #{tpu_custom_call.1} parent=43 // pred_check_branch
          %349 = sbr.rel (%p347) target = $region60
        $region59: #{tpu_custom_call.1} parent=43 // pred_region
          %351 = dma.done [#allocation8], 1024
        $region60: #{tpu_custom_call.1} parent=43 // pred_fallthru
          _
        // Predicated region
        $region61: #{tpu_custom_call.1} parent=43 // pred_check
          %p352 = pneg %p154
        $region62: #{tpu_custom_call.1} parent=43 // pred_check_branch
          %354 = sbr.rel (%p352) target = $region64
        $region63: #{tpu_custom_call.1} parent=43 // pred_region
          %356 = dma.done [#allocation12], 1024
        $region64: #{tpu_custom_call.1} parent=43 // pred_fallthru
          _
        %s357 = sand.u32 %s25, 1
        %s358 = scalar_lea.sflag [#allocation5], %s357
        %s359 = sand.u32 %s47, 1
        %s360 = smul.addr %s359, 64
        %s361 = scalar_lea.vmem [#allocation4], %s360
        %p362 = pneg %p60
        %p363 = pneg %p57
        %p364 = pneg %p86
        %p365 = pneg %p83
        %s366 = sand.u32 %s25, 1
        %s367 = scalar_lea.sflag [#allocation5], %s366
        %s368 = sand.u32 %s99, 1
        %s369 = smul.addr %s368, 64
        %s370 = scalar_lea.vmem [#allocation9], %s369
        %p371 = pneg %p112
        %p372 = pneg %p109
        %p373 = pneg %p133
        %p374 = pneg %p130
        %p375 = pneg %p154
        %p376 = pneg %p151
        %p377 = pneg %p175
        %p378 = pneg %p172
        %p379 = pneg %p201
        %p380 = pneg %p198
        %s381 = sand.u32 %s188, 1
        %s382 = scalar_lea.sflag [#allocation6], %s381
        %s383 = sand.u32 %s188, 1
        %s384 = smul.addr %s383, 64
        %s385 = scalar_lea.vmem [#allocation13], %s384
        %s386 = smul.u32 4, %s29
        %s387 = smul.u32 2, %s30
        %s388 = smul.u32 32, %s30
        %s389 = smul.u32 16, %s29
        %s390 = smul.u32 16, %s29
        %p391 = scmp.eq.s32.totalorder %s30, 0
        // Predicated region
        $region65: #{tpu_custom_call.1} parent=43 // pred_check
          %p392 = pneg %p391
        $region66: #{tpu_custom_call.1} parent=43 // pred_check_branch
          %394 = sbr.rel (%p392) target = $region68
        $region67: #{tpu_custom_call.1} parent=43 // pred_region
          %395 = vst [vmem:[#allocation2] sm:$0xff] 0.0
          %396 = vst [vmem:[#allocation2 + $0x8] sm:$0xff] 0.0
          %397 = vst [vmem:[#allocation2 + $0x10] sm:$0xff] 0.0
          %398 = vst [vmem:[#allocation2 + $0x18] sm:$0xff] 0.0
          %399 = vst [vmem:[#allocation2 + $0x20] sm:$0xff] 0.0
          %400 = vst [vmem:[#allocation2 + $0x28] sm:$0xff] 0.0
          %401 = vst [vmem:[#allocation2 + $0x30] sm:$0xff] 0.0
          %402 = vst [vmem:[#allocation2 + $0x38] sm:$0xff] 0.0
          %403 = vst [vmem:[#allocation2 + $0x40] sm:$0xff] 0.0
          %404 = vst [vmem:[#allocation2 + $0x48] sm:$0xff] 0.0
          %405 = vst [vmem:[#allocation2 + $0x50] sm:$0xff] 0.0
          %406 = vst [vmem:[#allocation2 + $0x58] sm:$0xff] 0.0
          %407 = vst [vmem:[#allocation2 + $0x60] sm:$0xff] 0.0
          %408 = vst [vmem:[#allocation2 + $0x68] sm:$0xff] 0.0
          %409 = vst [vmem:[#allocation2 + $0x70] sm:$0xff] 0.0
          %410 = vst [vmem:[#allocation2 + $0x78] sm:$0xff] 0.0
          %vm411 = vcmask 7168
          %412 = vst.msk [vmem:[#allocation3] sm:$0xff] %vm411, 0.0
          %413 = vst.msk [vmem:[#allocation3 + $0x8] sm:$0xff] %vm411, 0.0
          %414 = vst.msk [vmem:[#allocation3 + $0x10] sm:$0xff] %vm411, 0.0
          %415 = vst.msk [vmem:[#allocation3 + $0x18] sm:$0xff] %vm411, 0.0
          %416 = vst.msk [vmem:[#allocation3 + $0x20] sm:$0xff] %vm411, 0.0
          %417 = vst.msk [vmem:[#allocation3 + $0x28] sm:$0xff] %vm411, 0.0
          %418 = vst.msk [vmem:[#allocation3 + $0x30] sm:$0xff] %vm411, 0.0
          %419 = vst.msk [vmem:[#allocation3 + $0x38] sm:$0xff] %vm411, 0.0
          %420 = vst.msk [vmem:[#allocation3 + $0x40] sm:$0xff] %vm411, 0.0
          %421 = vst.msk [vmem:[#allocation3 + $0x48] sm:$0xff] %vm411, 0.0
          %422 = vst.msk [vmem:[#allocation3 + $0x50] sm:$0xff] %vm411, 0.0
          %423 = vst.msk [vmem:[#allocation3 + $0x58] sm:$0xff] %vm411, 0.0
          %424 = vst.msk [vmem:[#allocation3 + $0x60] sm:$0xff] %vm411, 0.0
          %425 = vst.msk [vmem:[#allocation3 + $0x68] sm:$0xff] %vm411, 0.0
          %426 = vst.msk [vmem:[#allocation3 + $0x70] sm:$0xff] %vm411, 0.0
          %427 = vst.msk [vmem:[#allocation3 + $0x78] sm:$0xff] %vm411, 0.0
        $region68: #{tpu_custom_call.1} parent=43 // pred_fallthru
          _
        %v428 = vld [vmem:[%s326] sm:$0xff]
        %v429 = vld [vmem:[%s326 + $0x8] sm:$0xff]
        %v430 = vld [vmem:[%s326 + $0x10] sm:$0xff]
        %v431 = vld [vmem:[%s326 + $0x18] sm:$0xff]
        %v432 = vld [vmem:[%s326 + $0x20] sm:$0xff]
        %v433 = vld [vmem:[%s326 + $0x28] sm:$0xff]
        %v434 = vld [vmem:[%s326 + $0x30] sm:$0xff]
        %v435 = vld [vmem:[%s326 + $0x38] sm:$0xff]
        %v436 = vunpack.c.0.s8 %v428
        %v437 = vunpack.c.0.s8 %v429
        %v438 = vunpack.c.1.s8 %v428
        %v439 = vunpack.c.1.s8 %v429
        %v440 = vunpack.c.2.s8 %v428
        %v441 = vunpack.c.2.s8 %v429
        %v442 = vunpack.c.3.s8 %v428
        %v443 = vunpack.c.3.s8 %v429
        %v444 = vunpack.c.0.s8 %v430
        %v445 = vunpack.c.0.s8 %v431
        %v446 = vunpack.c.1.s8 %v430
        %v447 = vunpack.c.1.s8 %v431
        %v448 = vunpack.c.2.s8 %v430
        %v449 = vunpack.c.2.s8 %v431
        %v450 = vunpack.c.3.s8 %v430
        %v451 = vunpack.c.3.s8 %v431
        %v452 = vunpack.c.0.s8 %v432
        %v453 = vunpack.c.0.s8 %v433
        %v454 = vunpack.c.1.s8 %v432
        %v455 = vunpack.c.1.s8 %v433
        %v456 = vunpack.c.2.s8 %v432
        %v457 = vunpack.c.2.s8 %v433
        %v458 = vunpack.c.3.s8 %v432
        %v459 = vunpack.c.3.s8 %v433
        %v460 = vunpack.c.0.s8 %v434
        %v461 = vunpack.c.0.s8 %v435
        %v462 = vunpack.c.1.s8 %v434
        %v463 = vunpack.c.1.s8 %v435
        %v464 = vunpack.c.2.s8 %v434
        %v465 = vunpack.c.2.s8 %v435
        %v466 = vunpack.c.3.s8 %v434
        %v467 = vunpack.c.3.s8 %v435
        %v468 = vcvt.s32.f32 %v436
        %v469 = vcvt.s32.f32 %v437
        %v470 = vcvt.s32.f32 %v438
        %v471 = vcvt.s32.f32 %v439
        %v472 = vcvt.s32.f32 %v440
        %v473 = vcvt.s32.f32 %v441
        %v474 = vcvt.s32.f32 %v442
        %v475 = vcvt.s32.f32 %v443
        %v476 = vcvt.s32.f32 %v444
        %v477 = vcvt.s32.f32 %v445
        %v478 = vcvt.s32.f32 %v446
        %v479 = vcvt.s32.f32 %v447
        %v480 = vcvt.s32.f32 %v448
        %v481 = vcvt.s32.f32 %v449
        %v482 = vcvt.s32.f32 %v450
        %v483 = vcvt.s32.f32 %v451
        %v484 = vcvt.s32.f32 %v452
        %v485 = vcvt.s32.f32 %v453
        %v486 = vcvt.s32.f32 %v454
        %v487 = vcvt.s32.f32 %v455
        %v488 = vcvt.s32.f32 %v456
        %v489 = vcvt.s32.f32 %v457
        %v490 = vcvt.s32.f32 %v458
        %v491 = vcvt.s32.f32 %v459
        %v492 = vcvt.s32.f32 %v460
        %v493 = vcvt.s32.f32 %v461
        %v494 = vcvt.s32.f32 %v462
        %v495 = vcvt.s32.f32 %v463
        %v496 = vcvt.s32.f32 %v464
        %v497 = vcvt.s32.f32 %v465
        %v498 = vcvt.s32.f32 %v466
        %v499 = vcvt.s32.f32 %v467
        %v500 = vld [vmem:[#allocation2] sm:$0xff]
        %v501 = vld [vmem:[#allocation2 + $0x8] sm:$0xff]
        %v502 = vld [vmem:[#allocation2 + $0x10] sm:$0xff]
        %v503 = vld [vmem:[#allocation2 + $0x18] sm:$0xff]
        %v504 = vld [vmem:[#allocation2 + $0x20] sm:$0xff]
        %v505 = vld [vmem:[#allocation2 + $0x28] sm:$0xff]
        %v506 = vld [vmem:[#allocation2 + $0x30] sm:$0xff]
        %v507 = vld [vmem:[#allocation2 + $0x38] sm:$0xff]
        %v508 = vld [vmem:[#allocation2 + $0x40] sm:$0xff]
        %v509 = vld [vmem:[#allocation2 + $0x48] sm:$0xff]
        %v510 = vld [vmem:[#allocation2 + $0x50] sm:$0xff]
        %v511 = vld [vmem:[#allocation2 + $0x58] sm:$0xff]
        %v512 = vld [vmem:[#allocation2 + $0x60] sm:$0xff]
        %v513 = vld [vmem:[#allocation2 + $0x68] sm:$0xff]
        %v514 = vld [vmem:[#allocation2 + $0x70] sm:$0xff]
        %v515 = vld [vmem:[#allocation2 + $0x78] sm:$0xff]
        %v516 = vpack.c.bf16 %v470, %v468
        %v517 = vpack.c.bf16 %v471, %v469
        %v518 = vpack.c.bf16 %v474, %v472
        %v519 = vpack.c.bf16 %v475, %v473
        %v520 = vpack.c.bf16 %v478, %v476
        %v521 = vpack.c.bf16 %v479, %v477
        %v522 = vpack.c.bf16 %v482, %v480
        %v523 = vpack.c.bf16 %v483, %v481
        %v524 = vpack.c.bf16 %v486, %v484
        %v525 = vpack.c.bf16 %v487, %v485
        %v526 = vpack.c.bf16 %v490, %v488
        %v527 = vpack.c.bf16 %v491, %v489
        %v528 = vpack.c.bf16 %v494, %v492
        %v529 = vpack.c.bf16 %v495, %v493
        %v530 = vpack.c.bf16 %v498, %v496
        %v531 = vpack.c.bf16 %v499, %v497
        %v532 = vld [vmem:[#allocation7] sm:$0xf]
        %v533 = vld [vmem:[#allocation7 + $0x4] sm:$0xf]
        %v534 = vld [vmem:[#allocation7 + $0x8] sm:$0xf]
        %v535 = vld [vmem:[#allocation7 + $0xc] sm:$0xf]
        %v536 = vld [vmem:[#allocation7 + $0x10] sm:$0xf]
        %v537 = vld [vmem:[#allocation7 + $0x14] sm:$0xf]
        %v538 = vld [vmem:[#allocation7 + $0x18] sm:$0xf]
        %v539 = vld [vmem:[#allocation7 + $0x1c] sm:$0xf]
        %v540 = vld [vmem:[#allocation7 + $0x20] sm:$0xf]
        %v541 = vld [vmem:[#allocation7 + $0x24] sm:$0xf]
        %v542 = vld [vmem:[#allocation7 + $0x28] sm:$0xf]
        %v543 = vld [vmem:[#allocation7 + $0x2c] sm:$0xf]
        %v544 = vld [vmem:[#allocation7 + $0x30] sm:$0xf]
        %v545 = vld [vmem:[#allocation7 + $0x34] sm:$0xf]
        %v546 = vld [vmem:[#allocation7 + $0x38] sm:$0xf]
        %v547 = vld [vmem:[#allocation7 + $0x3c] sm:$0xf]
        %v548 = vld [vmem:[#allocation7 + $0x40] sm:$0xf]
        %v549 = vld [vmem:[#allocation7 + $0x44] sm:$0xf]
        %v550 = vld [vmem:[#allocation7 + $0x48] sm:$0xf]
        %v551 = vld [vmem:[#allocation7 + $0x4c] sm:$0xf]
        %v552 = vld [vmem:[#allocation7 + $0x50] sm:$0xf]
        %v553 = vld [vmem:[#allocation7 + $0x54] sm:$0xf]
        %v554 = vld [vmem:[#allocation7 + $0x58] sm:$0xf]
        %v555 = vld [vmem:[#allocation7 + $0x5c] sm:$0xf]
        %v556 = vld [vmem:[#allocation7 + $0x60] sm:$0xf]
        %v557 = vld [vmem:[#allocation7 + $0x64] sm:$0xf]
        %v558 = vld [vmem:[#allocation7 + $0x68] sm:$0xf]
        %v559 = vld [vmem:[#allocation7 + $0x6c] sm:$0xf]
        %v560 = vld [vmem:[#allocation7 + $0x70] sm:$0xf]
        %v561 = vld [vmem:[#allocation7 + $0x74] sm:$0xf]
        %v562 = vld [vmem:[#allocation7 + $0x78] sm:$0xf]
        %v563 = vld [vmem:[#allocation7 + $0x7c] sm:$0xf]
        %v596 = vunpack.c.l.b16 %v532
        %v597 = vunpack.c.l.b16 %v533
        %v598 = vunpack.c.l.b16 %v534
        %v599 = vunpack.c.l.b16 %v535
        %v600 = vunpack.c.l.b16 %v536
        %v601 = vunpack.c.l.b16 %v537
        %v602 = vunpack.c.l.b16 %v538
        %v603 = vunpack.c.l.b16 %v539
        %v604 = vunpack.c.l.b16 %v540
        %v605 = vunpack.c.l.b16 %v541
        %v606 = vunpack.c.l.b16 %v542
        %v607 = vunpack.c.l.b16 %v543
        %v608 = vunpack.c.l.b16 %v544
        %v609 = vunpack.c.l.b16 %v545
        %v610 = vunpack.c.l.b16 %v546
        %v611 = vunpack.c.l.b16 %v547
        %v612 = vunpack.c.l.b16 %v548
        %v613 = vunpack.c.l.b16 %v549
        %v614 = vunpack.c.l.b16 %v550
        %v615 = vunpack.c.l.b16 %v551
        %v616 = vunpack.c.l.b16 %v552
        %v617 = vunpack.c.l.b16 %v553
        %v618 = vunpack.c.l.b16 %v554
        %v619 = vunpack.c.l.b16 %v555
        %v620 = vunpack.c.l.b16 %v556
        %v621 = vunpack.c.l.b16 %v557
        %v622 = vunpack.c.l.b16 %v558
        %v623 = vunpack.c.l.b16 %v559
        %v624 = vunpack.c.l.b16 %v560
        %v625 = vunpack.c.l.b16 %v561
        %v626 = vunpack.c.l.b16 %v562
        %v627 = vunpack.c.l.b16 %v563
        %v628 = vpack.c.b16 %v597, %v596
        %v629 = vpack.c.b16 %v599, %v598
        %v630 = vpack.c.b16 %v601, %v600
        %v631 = vpack.c.b16 %v603, %v602
        %v632 = vpack.c.b16 %v605, %v604
        %v633 = vpack.c.b16 %v607, %v606
        %v634 = vpack.c.b16 %v609, %v608
        %v635 = vpack.c.b16 %v611, %v610
        %v636 = vpack.c.b16 %v613, %v612
        %v637 = vpack.c.b16 %v615, %v614
        %v638 = vpack.c.b16 %v617, %v616
        %v639 = vpack.c.b16 %v619, %v618
        %v640 = vpack.c.b16 %v621, %v620
        %v641 = vpack.c.b16 %v623, %v622
        %v642 = vpack.c.b16 %v625, %v624
        %v643 = vpack.c.b16 %v627, %v626
        %660 = vmatpush.bf16.msra.mxu0 %v635
        %661 = vmatpush.bf16.msra.mxu0 %v634
        %662 = vmatpush.bf16.msra.mxu0 %v633
        %663 = vmatpush.bf16.msra.mxu0 %v632
        %664 = vmatpush.bf16.msra.mxu0 %v631
        %665 = vmatpush.bf16.msra.mxu0 %v630
        %666 = vmatpush.bf16.msra.mxu0 %v629
        %667 = vmatpush.bf16.msra.mxu0 %v628
        %668 = vmatmul.bf16.gmra.mxu0 %v516
        %v669 = vpop.f32.mrf.mxu0
        %v670 = vadd.f32 0.0, %v669
        %v671 = vpop.f32.mrf.mxu0
        %v672 = vadd.f32 0.0, %v671
        %673 = vmatmul.bf16.gmra.mxu0 %v518
        %v674 = vpop.f32.mrf.mxu0
        %v675 = vadd.f32 0.0, %v674
        %v676 = vpop.f32.mrf.mxu0
        %v677 = vadd.f32 0.0, %v676
        %678 = vmatmul.bf16.gmra.mxu0 %v520
        %v679 = vpop.f32.mrf.mxu0
        %v680 = vadd.f32 0.0, %v679
        %v681 = vpop.f32.mrf.mxu0
        %v682 = vadd.f32 0.0, %v681
        %683 = vmatmul.bf16.gmra.mxu0 %v522
        %v684 = vpop.f32.mrf.mxu0
        %v685 = vadd.f32 0.0, %v684
        %v686 = vpop.f32.mrf.mxu0
        %v687 = vadd.f32 0.0, %v686
        %688 = vmatmul.bf16.gmra.mxu0 %v524
        %v689 = vpop.f32.mrf.mxu0
        %v690 = vadd.f32 0.0, %v689
        %v691 = vpop.f32.mrf.mxu0
        %v692 = vadd.f32 0.0, %v691
        %693 = vmatmul.bf16.gmra.mxu0 %v526
        %v694 = vpop.f32.mrf.mxu0
        %v695 = vadd.f32 0.0, %v694
        %v696 = vpop.f32.mrf.mxu0
        %v697 = vadd.f32 0.0, %v696
        %698 = vmatmul.bf16.gmra.mxu0 %v528
        %v699 = vpop.f32.mrf.mxu0
        %v700 = vadd.f32 0.0, %v699
        %v701 = vpop.f32.mrf.mxu0
        %v702 = vadd.f32 0.0, %v701
        %703 = vmatmul.bf16.gmra.mxu0 %v530
        %v704 = vpop.f32.mrf.mxu0
        %v705 = vadd.f32 0.0, %v704
        %v706 = vpop.f32.mrf.mxu0
        %v707 = vadd.f32 0.0, %v706
        %708 = vdwg.mxu0
        %709 = vmatpush.bf16.msra.mxu0 %v643
        %710 = vmatpush.bf16.msra.mxu0 %v642
        %711 = vmatpush.bf16.msra.mxu0 %v641
        %712 = vmatpush.bf16.msra.mxu0 %v640
        %713 = vmatpush.bf16.msra.mxu0 %v639
        %714 = vmatpush.bf16.msra.mxu0 %v638
        %715 = vmatpush.bf16.msra.mxu0 %v637
        %716 = vmatpush.bf16.msra.mxu0 %v636
        %717 = vmatmul.bf16.gmra.mxu0 %v517
        %v718 = vpop.f32.mrf.mxu0
        %v719 = vadd.f32 %v670, %v718
        %v720 = vpop.f32.mrf.mxu0
        %v721 = vadd.f32 %v672, %v720
        %722 = vmatmul.bf16.gmra.mxu0 %v519
        %v723 = vpop.f32.mrf.mxu0
        %v724 = vadd.f32 %v675, %v723
        %v725 = vpop.f32.mrf.mxu0
        %v726 = vadd.f32 %v677, %v725
        %727 = vmatmul.bf16.gmra.mxu0 %v521
        %v728 = vpop.f32.mrf.mxu0
        %v729 = vadd.f32 %v680, %v728
        %v730 = vpop.f32.mrf.mxu0
        %v731 = vadd.f32 %v682, %v730
        %732 = vmatmul.bf16.gmra.mxu0 %v523
        %v733 = vpop.f32.mrf.mxu0
        %v734 = vadd.f32 %v685, %v733
        %v735 = vpop.f32.mrf.mxu0
        %v736 = vadd.f32 %v687, %v735
        %737 = vmatmul.bf16.gmra.mxu0 %v525
        %v738 = vpop.f32.mrf.mxu0
        %v739 = vadd.f32 %v690, %v738
        %v740 = vpop.f32.mrf.mxu0
        %v741 = vadd.f32 %v692, %v740
        %742 = vmatmul.bf16.gmra.mxu0 %v527
        %v743 = vpop.f32.mrf.mxu0
        %v744 = vadd.f32 %v695, %v743
        %v745 = vpop.f32.mrf.mxu0
        %v746 = vadd.f32 %v697, %v745
        %747 = vmatmul.bf16.gmra.mxu0 %v529
        %v748 = vpop.f32.mrf.mxu0
        %v749 = vadd.f32 %v700, %v748
        %v750 = vpop.f32.mrf.mxu0
        %v751 = vadd.f32 %v702, %v750
        %752 = vmatmul.bf16.gmra.mxu0 %v531
        %v753 = vpop.f32.mrf.mxu0
        %v754 = vadd.f32 %v705, %v753
        %v755 = vpop.f32.mrf.mxu0
        %v756 = vadd.f32 %v707, %v755
        %757 = vdwg.mxu0
        %v758 = vadd.f32 %v500, %v719
        %v759 = vadd.f32 %v501, %v721
        %v760 = vadd.f32 %v502, %v724
        %v761 = vadd.f32 %v503, %v726
        %v762 = vadd.f32 %v504, %v729
        %v763 = vadd.f32 %v505, %v731
        %v764 = vadd.f32 %v506, %v734
        %v765 = vadd.f32 %v507, %v736
        %v766 = vadd.f32 %v508, %v739
        %v767 = vadd.f32 %v509, %v741
        %v768 = vadd.f32 %v510, %v744
        %v769 = vadd.f32 %v511, %v746
        %v770 = vadd.f32 %v512, %v749
        %v771 = vadd.f32 %v513, %v751
        %v772 = vadd.f32 %v514, %v754
        %v773 = vadd.f32 %v515, %v756
        %774 = vst [vmem:[#allocation2] sm:$0xff] %v758
        %775 = vst [vmem:[#allocation2 + $0x8] sm:$0xff] %v759
        %776 = vst [vmem:[#allocation2 + $0x10] sm:$0xff] %v760
        %777 = vst [vmem:[#allocation2 + $0x18] sm:$0xff] %v761
        %778 = vst [vmem:[#allocation2 + $0x20] sm:$0xff] %v762
        %779 = vst [vmem:[#allocation2 + $0x28] sm:$0xff] %v763
        %780 = vst [vmem:[#allocation2 + $0x30] sm:$0xff] %v764
        %781 = vst [vmem:[#allocation2 + $0x38] sm:$0xff] %v765
        %782 = vst [vmem:[#allocation2 + $0x40] sm:$0xff] %v766
        %783 = vst [vmem:[#allocation2 + $0x48] sm:$0xff] %v767
        %784 = vst [vmem:[#allocation2 + $0x50] sm:$0xff] %v768
        %785 = vst [vmem:[#allocation2 + $0x58] sm:$0xff] %v769
        %786 = vst [vmem:[#allocation2 + $0x60] sm:$0xff] %v770
        %787 = vst [vmem:[#allocation2 + $0x68] sm:$0xff] %v771
        %788 = vst [vmem:[#allocation2 + $0x70] sm:$0xff] %v772
        %789 = vst [vmem:[#allocation2 + $0x78] sm:$0xff] %v773
        %v790 = vld [vmem:[#allocation3] sm:$0xff]
        %v791 = vld [vmem:[#allocation3 + $0x8] sm:$0xff]
        %v792 = vld [vmem:[#allocation3 + $0x10] sm:$0xff]
        %v793 = vld [vmem:[#allocation3 + $0x18] sm:$0xff]
        %v794 = vld [vmem:[#allocation3 + $0x20] sm:$0xff]
        %v795 = vld [vmem:[#allocation3 + $0x28] sm:$0xff]
        %v796 = vld [vmem:[#allocation3 + $0x30] sm:$0xff]
        %v797 = vld [vmem:[#allocation3 + $0x38] sm:$0xff]
        %v798 = vld [vmem:[#allocation3 + $0x40] sm:$0xff]
        %v799 = vld [vmem:[#allocation3 + $0x48] sm:$0xff]
        %v800 = vld [vmem:[#allocation3 + $0x50] sm:$0xff]
        %v801 = vld [vmem:[#allocation3 + $0x58] sm:$0xff]
        %v802 = vld [vmem:[#allocation3 + $0x60] sm:$0xff]
        %v803 = vld [vmem:[#allocation3 + $0x68] sm:$0xff]
        %v804 = vld [vmem:[#allocation3 + $0x70] sm:$0xff]
        %v805 = vld [vmem:[#allocation3 + $0x78] sm:$0xff]
        %v806 = vadd.f32 %v468, %v469
        %807 = vadd.xlane.f32.xlu0 %v806
        %v808 = vpop.xlane.xlu0 %807
        %v809 = vadd.f32 %v470, %v471
        %810 = vadd.xlane.f32.xlu0 %v809
        %v811 = vpop.xlane.xlu0 %810
        %v812 = vadd.f32 %v472, %v473
        %813 = vadd.xlane.f32.xlu0 %v812
        %v814 = vpop.xlane.xlu0 %813
        %v815 = vadd.f32 %v474, %v475
        %816 = vadd.xlane.f32.xlu0 %v815
        %v817 = vpop.xlane.xlu0 %816
        %v818 = vadd.f32 %v476, %v477
        %819 = vadd.xlane.f32.xlu0 %v818
        %v820 = vpop.xlane.xlu0 %819
        %v821 = vadd.f32 %v478, %v479
        %822 = vadd.xlane.f32.xlu0 %v821
        %v823 = vpop.xlane.xlu0 %822
        %v824 = vadd.f32 %v480, %v481
        %825 = vadd.xlane.f32.xlu0 %v824
        %v826 = vpop.xlane.xlu0 %825
        %v827 = vadd.f32 %v482, %v483
        %828 = vadd.xlane.f32.xlu0 %v827
        %v829 = vpop.xlane.xlu0 %828
        %v830 = vadd.f32 %v484, %v485
        %831 = vadd.xlane.f32.xlu0 %v830
        %v832 = vpop.xlane.xlu0 %831
        %v833 = vadd.f32 %v486, %v487
        %834 = vadd.xlane.f32.xlu0 %v833
        %v835 = vpop.xlane.xlu0 %834
        %v836 = vadd.f32 %v488, %v489
        %837 = vadd.xlane.f32.xlu0 %v836
        %v838 = vpop.xlane.xlu0 %837
        %v839 = vadd.f32 %v490, %v491
        %840 = vadd.xlane.f32.xlu0 %v839
        %v841 = vpop.xlane.xlu0 %840
        %v842 = vadd.f32 %v492, %v493
        %843 = vadd.xlane.f32.xlu0 %v842
        %v844 = vpop.xlane.xlu0 %843
        %v845 = vadd.f32 %v494, %v495
        %846 = vadd.xlane.f32.xlu0 %v845
        %v847 = vpop.xlane.xlu0 %846
        %v848 = vadd.f32 %v496, %v497
        %849 = vadd.xlane.f32.xlu0 %v848
        %v850 = vpop.xlane.xlu0 %849
        %v851 = vadd.f32 %v498, %v499
        %852 = vadd.xlane.f32.xlu0 %v851
        %v853 = vpop.xlane.xlu0 %852
        %v854 = vadd.f32 %v790, %v808
        %v855 = vadd.f32 %v791, %v811
        %v856 = vadd.f32 %v792, %v814
        %v857 = vadd.f32 %v793, %v817
        %v858 = vadd.f32 %v794, %v820
        %v859 = vadd.f32 %v795, %v823
        %v860 = vadd.f32 %v796, %v826
        %v861 = vadd.f32 %v797, %v829
        %v862 = vadd.f32 %v798, %v832
        %v863 = vadd.f32 %v799, %v835
        %v864 = vadd.f32 %v800, %v838
        %v865 = vadd.f32 %v801, %v841
        %v866 = vadd.f32 %v802, %v844
        %v867 = vadd.f32 %v803, %v847
        %v868 = vadd.f32 %v804, %v850
        %v869 = vadd.f32 %v805, %v853
        %vm870 = vcmask 7168
        %871 = vst.msk [vmem:[#allocation3] sm:$0xff] %vm870, %v854
        %872 = vst.msk [vmem:[#allocation3 + $0x8] sm:$0xff] %vm870, %v855
        %873 = vst.msk [vmem:[#allocation3 + $0x10] sm:$0xff] %vm870, %v856
        %874 = vst.msk [vmem:[#allocation3 + $0x18] sm:$0xff] %vm870, %v857
        %875 = vst.msk [vmem:[#allocation3 + $0x20] sm:$0xff] %vm870, %v858
        %876 = vst.msk [vmem:[#allocation3 + $0x28] sm:$0xff] %vm870, %v859
        %877 = vst.msk [vmem:[#allocation3 + $0x30] sm:$0xff] %vm870, %v860
        %878 = vst.msk [vmem:[#allocation3 + $0x38] sm:$0xff] %vm870, %v861
        %879 = vst.msk [vmem:[#allocation3 + $0x40] sm:$0xff] %vm870, %v862
        %880 = vst.msk [vmem:[#allocation3 + $0x48] sm:$0xff] %vm870, %v863
        %881 = vst.msk [vmem:[#allocation3 + $0x50] sm:$0xff] %vm870, %v864
        %882 = vst.msk [vmem:[#allocation3 + $0x58] sm:$0xff] %vm870, %v865
        %883 = vst.msk [vmem:[#allocation3 + $0x60] sm:$0xff] %vm870, %v866
        %884 = vst.msk [vmem:[#allocation3 + $0x68] sm:$0xff] %vm870, %v867
        %885 = vst.msk [vmem:[#allocation3 + $0x70] sm:$0xff] %vm870, %v868
        %886 = vst.msk [vmem:[#allocation3 + $0x78] sm:$0xff] %vm870, %v869
        // Predicated region
        $region69: #{tpu_custom_call.1} parent=43 // pred_check
          %p887 = pneg %p391
        $region70: #{tpu_custom_call.1} parent=43 // pred_check_branch
          %889 = sbr.rel (%p887) target = $region72
        $region71: #{tpu_custom_call.1} parent=43 // pred_region
          %v890 = vld [vmem:[#allocation3] sm:$0xff]
          %v891 = vld [vmem:[#allocation3 + $0x8] sm:$0xff]
          %v892 = vld [vmem:[#allocation3 + $0x10] sm:$0xff]
          %v893 = vld [vmem:[#allocation3 + $0x18] sm:$0xff]
          %v894 = vld [vmem:[#allocation3 + $0x20] sm:$0xff]
          %v895 = vld [vmem:[#allocation3 + $0x28] sm:$0xff]
          %v896 = vld [vmem:[#allocation3 + $0x30] sm:$0xff]
          %v897 = vld [vmem:[#allocation3 + $0x38] sm:$0xff]
          %v898 = vld [vmem:[#allocation3 + $0x40] sm:$0xff]
          %v899 = vld [vmem:[#allocation3 + $0x48] sm:$0xff]
          %v900 = vld [vmem:[#allocation3 + $0x50] sm:$0xff]
          %v901 = vld [vmem:[#allocation3 + $0x58] sm:$0xff]
          %v902 = vld [vmem:[#allocation3 + $0x60] sm:$0xff]
          %v903 = vld [vmem:[#allocation3 + $0x68] sm:$0xff]
          %v904 = vld [vmem:[#allocation3 + $0x70] sm:$0xff]
          %v905 = vld [vmem:[#allocation3 + $0x78] sm:$0xff]
          %v906 = vmax.f32 %v890, 1.0
          %v907 = vmax.f32 %v891, 1.0
          %v908 = vmax.f32 %v892, 1.0
          %v909 = vmax.f32 %v893, 1.0
          %v910 = vmax.f32 %v894, 1.0
          %v911 = vmax.f32 %v895, 1.0
          %v912 = vmax.f32 %v896, 1.0
          %v913 = vmax.f32 %v897, 1.0
          %v914 = vmax.f32 %v898, 1.0
          %v915 = vmax.f32 %v899, 1.0
          %v916 = vmax.f32 %v900, 1.0
          %v917 = vmax.f32 %v901, 1.0
          %v918 = vmax.f32 %v902, 1.0
          %v919 = vmax.f32 %v903, 1.0
          %v920 = vmax.f32 %v904, 1.0
          %v921 = vmax.f32 %v905, 1.0
          %v922 = vrcp.pop %v906
          %v923 = vmul.f32 %v906, %v922
          %v924 = vsub.f32 1.0, %v923
          %v925 = vmul.f32 %v922, %v924
          %v926 = vadd.f32 %v922, %v925
          %vm927 = vweird.f32 %v906
          %vm928 = vweird.f32 %v922
          %vm929 = vmor %vm927, %vm928
          %v930 = vsel %vm929, %v922, %v926
          %v931 = vand.u32 2147483647, %v906
          %vm932 = vcmp.eq.f32.partialorder %v931, 8.507059e+37
          %v933 = vand.u32 %v906, 2147483648
          %v934 = vor.u32 1.1754944e-38, %v933
          %v935 = vsel %vm932, %v934, %v930
          %v936 = vmul.f32 1.0, %v935
          %v937 = vrcp.pop %v907
          %v938 = vmul.f32 %v907, %v937
          %v939 = vsub.f32 1.0, %v938
          %v940 = vmul.f32 %v937, %v939
          %v941 = vadd.f32 %v937, %v940
          %vm942 = vweird.f32 %v907
          %vm943 = vweird.f32 %v937
          %vm944 = vmor %vm942, %vm943
          %v945 = vsel %vm944, %v937, %v941
          %v946 = vand.u32 2147483647, %v907
          %vm947 = vcmp.eq.f32.partialorder %v946, 8.507059e+37
          %v948 = vand.u32 %v907, 2147483648
          %v949 = vor.u32 1.1754944e-38, %v948
          %v950 = vsel %vm947, %v949, %v945
          %v951 = vmul.f32 1.0, %v950
          %v952 = vrcp.pop %v908
          %v953 = vmul.f32 %v908, %v952
          %v954 = vsub.f32 1.0, %v953
          %v955 = vmul.f32 %v952, %v954
          %v956 = vadd.f32 %v952, %v955
          %vm957 = vweird.f32 %v908
          %vm958 = vweird.f32 %v952
          %vm959 = vmor %vm957, %vm958
          %v960 = vsel %vm959, %v952, %v956
          %v961 = vand.u32 2147483647, %v908
          %vm962 = vcmp.eq.f32.partialorder %v961, 8.507059e+37
          %v963 = vand.u32 %v908, 2147483648
          %v964 = vor.u32 1.1754944e-38, %v963
          %v965 = vsel %vm962, %v964, %v960
          %v966 = vmul.f32 1.0, %v965
          %v967 = vrcp.pop %v909
          %v968 = vmul.f32 %v909, %v967
          %v969 = vsub.f32 1.0, %v968
          %v970 = vmul.f32 %v967, %v969
          %v971 = vadd.f32 %v967, %v970
          %vm972 = vweird.f32 %v909
          %vm973 = vweird.f32 %v967
          %vm974 = vmor %vm972, %vm973
          %v975 = vsel %vm974, %v967, %v971
          %v976 = vand.u32 2147483647, %v909
          %vm977 = vcmp.eq.f32.partialorder %v976, 8.507059e+37
          %v978 = vand.u32 %v909, 2147483648
          %v979 = vor.u32 1.1754944e-38, %v978
          %v980 = vsel %vm977, %v979, %v975
          %v981 = vmul.f32 1.0, %v980
          %v982 = vrcp.pop %v910
          %v983 = vmul.f32 %v910, %v982
          %v984 = vsub.f32 1.0, %v983
          %v985 = vmul.f32 %v982, %v984
          %v986 = vadd.f32 %v982, %v985
          %vm987 = vweird.f32 %v910
          %vm988 = vweird.f32 %v982
          %vm989 = vmor %vm987, %vm988
          %v990 = vsel %vm989, %v982, %v986
          %v991 = vand.u32 2147483647, %v910
          %vm992 = vcmp.eq.f32.partialorder %v991, 8.507059e+37
          %v993 = vand.u32 %v910, 2147483648
          %v994 = vor.u32 1.1754944e-38, %v993
          %v995 = vsel %vm992, %v994, %v990
          %v996 = vmul.f32 1.0, %v995
          %v997 = vrcp.pop %v911
          %v998 = vmul.f32 %v911, %v997
          %v999 = vsub.f32 1.0, %v998
          %v1000 = vmul.f32 %v997, %v999
          %v1001 = vadd.f32 %v997, %v1000
          %vm1002 = vweird.f32 %v911
          %vm1003 = vweird.f32 %v997
          %vm1004 = vmor %vm1002, %vm1003
          %v1005 = vsel %vm1004, %v997, %v1001
          %v1006 = vand.u32 2147483647, %v911
          %vm1007 = vcmp.eq.f32.partialorder %v1006, 8.507059e+37
          %v1008 = vand.u32 %v911, 2147483648
          %v1009 = vor.u32 1.1754944e-38, %v1008
          %v1010 = vsel %vm1007, %v1009, %v1005
          %v1011 = vmul.f32 1.0, %v1010
          %v1012 = vrcp.pop %v912
          %v1013 = vmul.f32 %v912, %v1012
          %v1014 = vsub.f32 1.0, %v1013
          %v1015 = vmul.f32 %v1012, %v1014
          %v1016 = vadd.f32 %v1012, %v1015
          %vm1017 = vweird.f32 %v912
          %vm1018 = vweird.f32 %v1012
          %vm1019 = vmor %vm1017, %vm1018
          %v1020 = vsel %vm1019, %v1012, %v1016
          %v1021 = vand.u32 2147483647, %v912
          %vm1022 = vcmp.eq.f32.partialorder %v1021, 8.507059e+37
          %v1023 = vand.u32 %v912, 2147483648
          %v1024 = vor.u32 1.1754944e-38, %v1023
          %v1025 = vsel %vm1022, %v1024, %v1020
          %v1026 = vmul.f32 1.0, %v1025
          %v1027 = vrcp.pop %v913
          %v1028 = vmul.f32 %v913, %v1027
          %v1029 = vsub.f32 1.0, %v1028
          %v1030 = vmul.f32 %v1027, %v1029
          %v1031 = vadd.f32 %v1027, %v1030
          %vm1032 = vweird.f32 %v913
          %vm1033 = vweird.f32 %v1027
          %vm1034 = vmor %vm1032, %vm1033
          %v1035 = vsel %vm1034, %v1027, %v1031
          %v1036 = vand.u32 2147483647, %v913
          %vm1037 = vcmp.eq.f32.partialorder %v1036, 8.507059e+37
          %v1038 = vand.u32 %v913, 2147483648
          %v1039 = vor.u32 1.1754944e-38, %v1038
          %v1040 = vsel %vm1037, %v1039, %v1035
          %v1041 = vmul.f32 1.0, %v1040
          %v1042 = vrcp.pop %v914
          %v1043 = vmul.f32 %v914, %v1042
          %v1044 = vsub.f32 1.0, %v1043
          %v1045 = vmul.f32 %v1042, %v1044
          %v1046 = vadd.f32 %v1042, %v1045
          %vm1047 = vweird.f32 %v914
          %vm1048 = vweird.f32 %v1042
          %vm1049 = vmor %vm1047, %vm1048
          %v1050 = vsel %vm1049, %v1042, %v1046
          %v1051 = vand.u32 2147483647, %v914
          %vm1052 = vcmp.eq.f32.partialorder %v1051, 8.507059e+37
          %v1053 = vand.u32 %v914, 2147483648
          %v1054 = vor.u32 1.1754944e-38, %v1053
          %v1055 = vsel %vm1052, %v1054, %v1050
          %v1056 = vmul.f32 1.0, %v1055
          %v1057 = vrcp.pop %v915
          %v1058 = vmul.f32 %v915, %v1057
          %v1059 = vsub.f32 1.0, %v1058
          %v1060 = vmul.f32 %v1057, %v1059
          %v1061 = vadd.f32 %v1057, %v1060
          %vm1062 = vweird.f32 %v915
          %vm1063 = vweird.f32 %v1057
          %vm1064 = vmor %vm1062, %vm1063
          %v1065 = vsel %vm1064, %v1057, %v1061
          %v1066 = vand.u32 2147483647, %v915
          %vm1067 = vcmp.eq.f32.partialorder %v1066, 8.507059e+37
          %v1068 = vand.u32 %v915, 2147483648
          %v1069 = vor.u32 1.1754944e-38, %v1068
          %v1070 = vsel %vm1067, %v1069, %v1065
          %v1071 = vmul.f32 1.0, %v1070
          %v1072 = vrcp.pop %v916
          %v1073 = vmul.f32 %v916, %v1072
          %v1074 = vsub.f32 1.0, %v1073
          %v1075 = vmul.f32 %v1072, %v1074
          %v1076 = vadd.f32 %v1072, %v1075
          %vm1077 = vweird.f32 %v916
          %vm1078 = vweird.f32 %v1072
          %vm1079 = vmor %vm1077, %vm1078
          %v1080 = vsel %vm1079, %v1072, %v1076
          %v1081 = vand.u32 2147483647, %v916
          %vm1082 = vcmp.eq.f32.partialorder %v1081, 8.507059e+37
          %v1083 = vand.u32 %v916, 2147483648
          %v1084 = vor.u32 1.1754944e-38, %v1083
          %v1085 = vsel %vm1082, %v1084, %v1080
          %v1086 = vmul.f32 1.0, %v1085
          %v1087 = vrcp.pop %v917
          %v1088 = vmul.f32 %v917, %v1087
          %v1089 = vsub.f32 1.0, %v1088
          %v1090 = vmul.f32 %v1087, %v1089
          %v1091 = vadd.f32 %v1087, %v1090
          %vm1092 = vweird.f32 %v917
          %vm1093 = vweird.f32 %v1087
          %vm1094 = vmor %vm1092, %vm1093
          %v1095 = vsel %vm1094, %v1087, %v1091
          %v1096 = vand.u32 2147483647, %v917
          %vm1097 = vcmp.eq.f32.partialorder %v1096, 8.507059e+37
          %v1098 = vand.u32 %v917, 2147483648
          %v1099 = vor.u32 1.1754944e-38, %v1098
          %v1100 = vsel %vm1097, %v1099, %v1095
          %v1101 = vmul.f32 1.0, %v1100
          %v1102 = vrcp.pop %v918
          %v1103 = vmul.f32 %v918, %v1102
          %v1104 = vsub.f32 1.0, %v1103
          %v1105 = vmul.f32 %v1102, %v1104
          %v1106 = vadd.f32 %v1102, %v1105
          %vm1107 = vweird.f32 %v918
          %vm1108 = vweird.f32 %v1102
          %vm1109 = vmor %vm1107, %vm1108
          %v1110 = vsel %vm1109, %v1102, %v1106
          %v1111 = vand.u32 2147483647, %v918
          %vm1112 = vcmp.eq.f32.partialorder %v1111, 8.507059e+37
          %v1113 = vand.u32 %v918, 2147483648
          %v1114 = vor.u32 1.1754944e-38, %v1113
          %v1115 = vsel %vm1112, %v1114, %v1110
          %v1116 = vmul.f32 1.0, %v1115
          %v1117 = vrcp.pop %v919
          %v1118 = vmul.f32 %v919, %v1117
          %v1119 = vsub.f32 1.0, %v1118
          %v1120 = vmul.f32 %v1117, %v1119
          %v1121 = vadd.f32 %v1117, %v1120
          %vm1122 = vweird.f32 %v919
          %vm1123 = vweird.f32 %v1117
          %vm1124 = vmor %vm1122, %vm1123
          %v1125 = vsel %vm1124, %v1117, %v1121
          %v1126 = vand.u32 2147483647, %v919
          %vm1127 = vcmp.eq.f32.partialorder %v1126, 8.507059e+37
          %v1128 = vand.u32 %v919, 2147483648
          %v1129 = vor.u32 1.1754944e-38, %v1128
          %v1130 = vsel %vm1127, %v1129, %v1125
          %v1131 = vmul.f32 1.0, %v1130
          %v1132 = vrcp.pop %v920
          %v1133 = vmul.f32 %v920, %v1132
          %v1134 = vsub.f32 1.0, %v1133
          %v1135 = vmul.f32 %v1132, %v1134
          %v1136 = vadd.f32 %v1132, %v1135
          %vm1137 = vweird.f32 %v920
          %vm1138 = vweird.f32 %v1132
          %vm1139 = vmor %vm1137, %vm1138
          %v1140 = vsel %vm1139, %v1132, %v1136
          %v1141 = vand.u32 2147483647, %v920
          %vm1142 = vcmp.eq.f32.partialorder %v1141, 8.507059e+37
          %v1143 = vand.u32 %v920, 2147483648
          %v1144 = vor.u32 1.1754944e-38, %v1143
          %v1145 = vsel %vm1142, %v1144, %v1140
          %v1146 = vmul.f32 1.0, %v1145
          %v1147 = vrcp.pop %v921
          %v1148 = vmul.f32 %v921, %v1147
          %v1149 = vsub.f32 1.0, %v1148
          %v1150 = vmul.f32 %v1147, %v1149
          %v1151 = vadd.f32 %v1147, %v1150
          %vm1152 = vweird.f32 %v921
          %vm1153 = vweird.f32 %v1147
          %vm1154 = vmor %vm1152, %vm1153
          %v1155 = vsel %vm1154, %v1147, %v1151
          %v1156 = vand.u32 2147483647, %v921
          %vm1157 = vcmp.eq.f32.partialorder %v1156, 8.507059e+37
          %v1158 = vand.u32 %v921, 2147483648
          %v1159 = vor.u32 1.1754944e-38, %v1158
          %v1160 = vsel %vm1157, %v1159, %v1155
          %v1161 = vmul.f32 1.0, %v1160
          %v1162 = vld [vmem:[#allocation2] sm:$0xff]
          %v1163 = vld [vmem:[#allocation2 + $0x8] sm:$0xff]
          %v1164 = vld [vmem:[#allocation2 + $0x10] sm:$0xff]
          %v1165 = vld [vmem:[#allocation2 + $0x18] sm:$0xff]
          %v1166 = vld [vmem:[#allocation2 + $0x20] sm:$0xff]
          %v1167 = vld [vmem:[#allocation2 + $0x28] sm:$0xff]
          %v1168 = vld [vmem:[#allocation2 + $0x30] sm:$0xff]
          %v1169 = vld [vmem:[#allocation2 + $0x38] sm:$0xff]
          %v1170 = vld [vmem:[#allocation2 + $0x40] sm:$0xff]
          %v1171 = vld [vmem:[#allocation2 + $0x48] sm:$0xff]
          %v1172 = vld [vmem:[#allocation2 + $0x50] sm:$0xff]
          %v1173 = vld [vmem:[#allocation2 + $0x58] sm:$0xff]
          %v1174 = vld [vmem:[#allocation2 + $0x60] sm:$0xff]
          %v1175 = vld [vmem:[#allocation2 + $0x68] sm:$0xff]
          %v1176 = vld [vmem:[#allocation2 + $0x70] sm:$0xff]
          %v1177 = vld [vmem:[#allocation2 + $0x78] sm:$0xff]
          %1179 = vset.pattern.permute.xlu0 0
          %1180 = vperm.xlu0 %1179, %v936
          %v1181 = vpop.permute.xlu0 %1180
          %1184 = vset.pattern.permute.xlu0 0
          %1185 = vperm.xlu0 %1184, %v951
          %v1186 = vpop.permute.xlu0 %1185
          %1189 = vset.pattern.permute.xlu0 0
          %1190 = vperm.xlu0 %1189, %v966
          %v1191 = vpop.permute.xlu0 %1190
          %1194 = vset.pattern.permute.xlu0 0
          %1195 = vperm.xlu0 %1194, %v981
          %v1196 = vpop.permute.xlu0 %1195
          %1199 = vset.pattern.permute.xlu0 0
          %1200 = vperm.xlu0 %1199, %v996
          %v1201 = vpop.permute.xlu0 %1200
          %1204 = vset.pattern.permute.xlu0 0
          %1205 = vperm.xlu0 %1204, %v1011
          %v1206 = vpop.permute.xlu0 %1205
          %1209 = vset.pattern.permute.xlu0 0
          %1210 = vperm.xlu0 %1209, %v1026
          %v1211 = vpop.permute.xlu0 %1210
          %1214 = vset.pattern.permute.xlu0 0
          %1215 = vperm.xlu0 %1214, %v1041
          %v1216 = vpop.permute.xlu0 %1215
          %1219 = vset.pattern.permute.xlu0 0
          %1220 = vperm.xlu0 %1219, %v1056
          %v1221 = vpop.permute.xlu0 %1220
          %1224 = vset.pattern.permute.xlu0 0
          %1225 = vperm.xlu0 %1224, %v1071
          %v1226 = vpop.permute.xlu0 %1225
          %1229 = vset.pattern.permute.xlu0 0
          %1230 = vperm.xlu0 %1229, %v1086
          %v1231 = vpop.permute.xlu0 %1230
          %1234 = vset.pattern.permute.xlu0 0
          %1235 = vperm.xlu0 %1234, %v1101
          %v1236 = vpop.permute.xlu0 %1235
          %1239 = vset.pattern.permute.xlu0 0
          %1240 = vperm.xlu0 %1239, %v1116
          %v1241 = vpop.permute.xlu0 %1240
          %1244 = vset.pattern.permute.xlu0 0
          %1245 = vperm.xlu0 %1244, %v1131
          %v1246 = vpop.permute.xlu0 %1245
          %1249 = vset.pattern.permute.xlu0 0
          %1250 = vperm.xlu0 %1249, %v1146
          %v1251 = vpop.permute.xlu0 %1250
          %1254 = vset.pattern.permute.xlu0 0
          %1255 = vperm.xlu0 %1254, %v1161
          %v1256 = vpop.permute.xlu0 %1255
          %v1258 = vmul.f32 %v1162, %v1181
          %v1259 = vmul.f32 %v1163, %v1186
          %v1260 = vmul.f32 %v1164, %v1191
          %v1261 = vmul.f32 %v1165, %v1196
          %v1262 = vmul.f32 %v1166, %v1201
          %v1263 = vmul.f32 %v1167, %v1206
          %v1264 = vmul.f32 %v1168, %v1211
          %v1265 = vmul.f32 %v1169, %v1216
          %v1266 = vmul.f32 %v1170, %v1221
          %v1267 = vmul.f32 %v1171, %v1226
          %v1268 = vmul.f32 %v1172, %v1231
          %v1269 = vmul.f32 %v1173, %v1236
          %v1270 = vmul.f32 %v1174, %v1241
          %v1271 = vmul.f32 %v1175, %v1246
          %v1272 = vmul.f32 %v1176, %v1251
          %v1273 = vmul.f32 %v1177, %v1256
          %v1274 = vpack.c.bf16 %v1259, %v1258
          %v1275 = vpack.c.bf16 %v1261, %v1260
          %v1276 = vpack.c.bf16 %v1263, %v1262
          %v1277 = vpack.c.bf16 %v1265, %v1264
          %v1278 = vpack.c.bf16 %v1267, %v1266
          %v1279 = vpack.c.bf16 %v1269, %v1268
          %v1280 = vpack.c.bf16 %v1271, %v1270
          %v1281 = vpack.c.bf16 %v1273, %v1272
          %v1282 = vld [vmem:[#allocation10] sm:$0xf]
          %v1283 = vld [vmem:[#allocation10 + $0x4] sm:$0xf]
          %v1284 = vld [vmem:[#allocation10 + $0x8] sm:$0xf]
          %v1285 = vld [vmem:[#allocation10 + $0xc] sm:$0xf]
          %v1286 = vld [vmem:[#allocation10 + $0x10] sm:$0xf]
          %v1287 = vld [vmem:[#allocation10 + $0x14] sm:$0xf]
          %v1288 = vld [vmem:[#allocation10 + $0x18] sm:$0xf]
          %v1289 = vld [vmem:[#allocation10 + $0x1c] sm:$0xf]
          %v1290 = vld [vmem:[#allocation10 + $0x20] sm:$0xf]
          %v1291 = vld [vmem:[#allocation10 + $0x24] sm:$0xf]
          %v1292 = vld [vmem:[#allocation10 + $0x28] sm:$0xf]
          %v1293 = vld [vmem:[#allocation10 + $0x2c] sm:$0xf]
          %v1294 = vld [vmem:[#allocation10 + $0x30] sm:$0xf]
          %v1295 = vld [vmem:[#allocation10 + $0x34] sm:$0xf]
          %v1296 = vld [vmem:[#allocation10 + $0x38] sm:$0xf]
          %v1297 = vld [vmem:[#allocation10 + $0x3c] sm:$0xf]
          %v1298 = vld [vmem:[%s341] sm:$0xf]
          %v1299 = vld [vmem:[%s341 + $0x4] sm:$0xf]
          %v1300 = vld [vmem:[%s341 + $0x8] sm:$0xf]
          %v1301 = vld [vmem:[%s341 + $0xc] sm:$0xf]
          %v1302 = vld [vmem:[%s341 + $0x10] sm:$0xf]
          %v1303 = vld [vmem:[%s341 + $0x14] sm:$0xf]
          %v1304 = vld [vmem:[%s341 + $0x18] sm:$0xf]
          %v1305 = vld [vmem:[%s341 + $0x1c] sm:$0xf]
          %v1306 = vld [vmem:[%s341 + $0x20] sm:$0xf]
          %v1307 = vld [vmem:[%s341 + $0x24] sm:$0xf]
          %v1308 = vld [vmem:[%s341 + $0x28] sm:$0xf]
          %v1309 = vld [vmem:[%s341 + $0x2c] sm:$0xf]
          %v1310 = vld [vmem:[%s341 + $0x30] sm:$0xf]
          %v1311 = vld [vmem:[%s341 + $0x34] sm:$0xf]
          %v1312 = vld [vmem:[%s341 + $0x38] sm:$0xf]
          %v1313 = vld [vmem:[%s341 + $0x3c] sm:$0xf]
          %v1314 = vld [vmem:[#allocation11] sm:$0xf]
          %v1315 = vld [vmem:[#allocation11 + $0x4] sm:$0xf]
          %v1316 = vld [vmem:[#allocation11 + $0x8] sm:$0xf]
          %v1317 = vld [vmem:[#allocation11 + $0xc] sm:$0xf]
          %v1318 = vld [vmem:[#allocation11 + $0x10] sm:$0xf]
          %v1319 = vld [vmem:[#allocation11 + $0x14] sm:$0xf]
          %v1320 = vld [vmem:[#allocation11 + $0x18] sm:$0xf]
          %v1321 = vld [vmem:[#allocation11 + $0x1c] sm:$0xf]
          %v1322 = vld [vmem:[#allocation11 + $0x20] sm:$0xf]
          %v1323 = vld [vmem:[#allocation11 + $0x24] sm:$0xf]
          %v1324 = vld [vmem:[#allocation11 + $0x28] sm:$0xf]
          %v1325 = vld [vmem:[#allocation11 + $0x2c] sm:$0xf]
          %v1326 = vld [vmem:[#allocation11 + $0x30] sm:$0xf]
          %v1327 = vld [vmem:[#allocation11 + $0x34] sm:$0xf]
          %v1328 = vld [vmem:[#allocation11 + $0x38] sm:$0xf]
          %v1329 = vld [vmem:[#allocation11 + $0x3c] sm:$0xf]
          %v1346 = vunpack.c.l.b16 %v1298
          %v1347 = vunpack.c.l.b16 %v1299
          %v1348 = vunpack.c.l.b16 %v1300
          %v1349 = vunpack.c.l.b16 %v1301
          %v1350 = vunpack.c.l.b16 %v1302
          %v1351 = vunpack.c.l.b16 %v1303
          %v1352 = vunpack.c.l.b16 %v1304
          %v1353 = vunpack.c.l.b16 %v1305
          %v1354 = vunpack.c.l.b16 %v1306
          %v1355 = vunpack.c.l.b16 %v1307
          %v1356 = vunpack.c.l.b16 %v1308
          %v1357 = vunpack.c.l.b16 %v1309
          %v1358 = vunpack.c.l.b16 %v1310
          %v1359 = vunpack.c.l.b16 %v1311
          %v1360 = vunpack.c.l.b16 %v1312
          %v1361 = vunpack.c.l.b16 %v1313
          %v1362 = vpack.c.b16 %v1347, %v1346
          %v1363 = vpack.c.b16 %v1349, %v1348
          %v1364 = vpack.c.b16 %v1351, %v1350
          %v1365 = vpack.c.b16 %v1353, %v1352
          %v1366 = vpack.c.b16 %v1355, %v1354
          %v1367 = vpack.c.b16 %v1357, %v1356
          %v1368 = vpack.c.b16 %v1359, %v1358
          %v1369 = vpack.c.b16 %v1361, %v1360
          %v1394 = vunpack.c.l.b16 %v1314
          %v1395 = vunpack.c.l.b16 %v1315
          %v1396 = vunpack.c.l.b16 %v1316
          %v1397 = vunpack.c.l.b16 %v1317
          %v1398 = vunpack.c.l.b16 %v1318
          %v1399 = vunpack.c.l.b16 %v1319
          %v1400 = vunpack.c.l.b16 %v1320
          %v1401 = vunpack.c.l.b16 %v1321
          %v1402 = vunpack.c.l.b16 %v1322
          %v1403 = vunpack.c.l.b16 %v1323
          %v1404 = vunpack.c.l.b16 %v1324
          %v1405 = vunpack.c.l.b16 %v1325
          %v1406 = vunpack.c.l.b16 %v1326
          %v1407 = vunpack.c.l.b16 %v1327
          %v1408 = vunpack.c.l.b16 %v1328
          %v1409 = vunpack.c.l.b16 %v1329
          %v1410 = vpack.c.b16 %v1395, %v1394
          %v1411 = vpack.c.b16 %v1397, %v1396
          %v1412 = vpack.c.b16 %v1399, %v1398
          %v1413 = vpack.c.b16 %v1401, %v1400
          %v1414 = vpack.c.b16 %v1403, %v1402
          %v1415 = vpack.c.b16 %v1405, %v1404
          %v1416 = vpack.c.b16 %v1407, %v1406
          %v1417 = vpack.c.b16 %v1409, %v1408
          %1426 = vmatpush.bf16.msra.mxu0 %v1417
          %1427 = vmatpush.bf16.msra.mxu0 %v1416
          %1428 = vmatpush.bf16.msra.mxu0 %v1415
          %1429 = vmatpush.bf16.msra.mxu0 %v1414
          %1430 = vmatpush.bf16.msra.mxu0 %v1413
          %1431 = vmatpush.bf16.msra.mxu0 %v1412
          %1432 = vmatpush.bf16.msra.mxu0 %v1411
          %1433 = vmatpush.bf16.msra.mxu0 %v1410
          %1434 = vmatmul.bf16.gmra.mxu0 %v1362
          %v1435 = vpop.f32.mrf.mxu0
          %v1436 = vadd.f32 0.0, %v1435
          %v1437 = vpop.f32.mrf.mxu0
          %v1438 = vadd.f32 0.0, %v1437
          %1439 = vmatmul.bf16.gmra.mxu0 %v1363
          %v1440 = vpop.f32.mrf.mxu0
          %v1441 = vadd.f32 0.0, %v1440
          %v1442 = vpop.f32.mrf.mxu0
          %v1443 = vadd.f32 0.0, %v1442
          %1444 = vmatmul.bf16.gmra.mxu0 %v1364
          %v1445 = vpop.f32.mrf.mxu0
          %v1446 = vadd.f32 0.0, %v1445
          %v1447 = vpop.f32.mrf.mxu0
          %v1448 = vadd.f32 0.0, %v1447
          %1449 = vmatmul.bf16.gmra.mxu0 %v1365
          %v1450 = vpop.f32.mrf.mxu0
          %v1451 = vadd.f32 0.0, %v1450
          %v1452 = vpop.f32.mrf.mxu0
          %v1453 = vadd.f32 0.0, %v1452
          %1454 = vmatmul.bf16.gmra.mxu0 %v1366
          %v1455 = vpop.f32.mrf.mxu0
          %v1456 = vadd.f32 0.0, %v1455
          %v1457 = vpop.f32.mrf.mxu0
          %v1458 = vadd.f32 0.0, %v1457
          %1459 = vmatmul.bf16.gmra.mxu0 %v1367
          %v1460 = vpop.f32.mrf.mxu0
          %v1461 = vadd.f32 0.0, %v1460
          %v1462 = vpop.f32.mrf.mxu0
          %v1463 = vadd.f32 0.0, %v1462
          %1464 = vmatmul.bf16.gmra.mxu0 %v1368
          %v1465 = vpop.f32.mrf.mxu0
          %v1466 = vadd.f32 0.0, %v1465
          %v1467 = vpop.f32.mrf.mxu0
          %v1468 = vadd.f32 0.0, %v1467
          %1469 = vmatmul.bf16.gmra.mxu0 %v1369
          %v1470 = vpop.f32.mrf.mxu0
          %v1471 = vadd.f32 0.0, %v1470
          %v1472 = vpop.f32.mrf.mxu0
          %v1473 = vadd.f32 0.0, %v1472
          %1474 = vdwg.mxu0
          %v1491 = vunpack.c.l.b16 %v1282
          %v1492 = vunpack.c.l.b16 %v1283
          %v1493 = vunpack.c.l.b16 %v1284
          %v1494 = vunpack.c.l.b16 %v1285
          %v1495 = vunpack.c.l.b16 %v1286
          %v1496 = vunpack.c.l.b16 %v1287
          %v1497 = vunpack.c.l.b16 %v1288
          %v1498 = vunpack.c.l.b16 %v1289
          %v1499 = vunpack.c.l.b16 %v1290
          %v1500 = vunpack.c.l.b16 %v1291
          %v1501 = vunpack.c.l.b16 %v1292
          %v1502 = vunpack.c.l.b16 %v1293
          %v1503 = vunpack.c.l.b16 %v1294
          %v1504 = vunpack.c.l.b16 %v1295
          %v1505 = vunpack.c.l.b16 %v1296
          %v1506 = vunpack.c.l.b16 %v1297
          %v1507 = vpack.c.b16 %v1492, %v1491
          %v1508 = vpack.c.b16 %v1494, %v1493
          %v1509 = vpack.c.b16 %v1496, %v1495
          %v1510 = vpack.c.b16 %v1498, %v1497
          %v1511 = vpack.c.b16 %v1500, %v1499
          %v1512 = vpack.c.b16 %v1502, %v1501
          %v1513 = vpack.c.b16 %v1504, %v1503
          %v1514 = vpack.c.b16 %v1506, %v1505
          %1523 = vmatpush.bf16.msra.mxu0 %v1514
          %1524 = vmatpush.bf16.msra.mxu0 %v1513
          %1525 = vmatpush.bf16.msra.mxu0 %v1512
          %1526 = vmatpush.bf16.msra.mxu0 %v1511
          %1527 = vmatpush.bf16.msra.mxu0 %v1510
          %1528 = vmatpush.bf16.msra.mxu0 %v1509
          %1529 = vmatpush.bf16.msra.mxu0 %v1508
          %1530 = vmatpush.bf16.msra.mxu0 %v1507
          %1531 = vmatmul.bf16.gmra.mxu0 %v1274
          %v1532 = vpop.f32.mrf.mxu0
          %v1533 = vadd.f32 %v1436, %v1532
          %v1534 = vpop.f32.mrf.mxu0
          %v1535 = vadd.f32 %v1438, %v1534
          %1536 = vmatmul.bf16.gmra.mxu0 %v1275
          %v1537 = vpop.f32.mrf.mxu0
          %v1538 = vadd.f32 %v1441, %v1537
          %v1539 = vpop.f32.mrf.mxu0
          %v1540 = vadd.f32 %v1443, %v1539
          %1541 = vmatmul.bf16.gmra.mxu0 %v1276
          %v1542 = vpop.f32.mrf.mxu0
          %v1543 = vadd.f32 %v1446, %v1542
          %v1544 = vpop.f32.mrf.mxu0
          %v1545 = vadd.f32 %v1448, %v1544
          %1546 = vmatmul.bf16.gmra.mxu0 %v1277
          %v1547 = vpop.f32.mrf.mxu0
          %v1548 = vadd.f32 %v1451, %v1547
          %v1549 = vpop.f32.mrf.mxu0
          %v1550 = vadd.f32 %v1453, %v1549
          %1551 = vmatmul.bf16.gmra.mxu0 %v1278
          %v1552 = vpop.f32.mrf.mxu0
          %v1553 = vadd.f32 %v1456, %v1552
          %v1554 = vpop.f32.mrf.mxu0
          %v1555 = vadd.f32 %v1458, %v1554
          %1556 = vmatmul.bf16.gmra.mxu0 %v1279
          %v1557 = vpop.f32.mrf.mxu0
          %v1558 = vadd.f32 %v1461, %v1557
          %v1559 = vpop.f32.mrf.mxu0
          %v1560 = vadd.f32 %v1463, %v1559
          %1561 = vmatmul.bf16.gmra.mxu0 %v1280
          %v1562 = vpop.f32.mrf.mxu0
          %v1563 = vadd.f32 %v1466, %v1562
          %v1564 = vpop.f32.mrf.mxu0
          %v1565 = vadd.f32 %v1468, %v1564
          %1566 = vmatmul.bf16.gmra.mxu0 %v1281
          %v1567 = vpop.f32.mrf.mxu0
          %v1568 = vadd.f32 %v1471, %v1567
          %v1569 = vpop.f32.mrf.mxu0
          %v1570 = vadd.f32 %v1473, %v1569
          %1571 = vdwg.mxu0
          %v1572 = vld [vmem:[%s5] sm:$0x1]
          %v1574 = vperm.slane %v1572, 0
          %v1576 = vadd.f32 %v1533, %v1574
          %v1577 = vadd.f32 %v1535, %v1574
          %v1578 = vadd.f32 %v1538, %v1574
          %v1579 = vadd.f32 %v1540, %v1574
          %v1580 = vadd.f32 %v1543, %v1574
          %v1581 = vadd.f32 %v1545, %v1574
          %v1582 = vadd.f32 %v1548, %v1574
          %v1583 = vadd.f32 %v1550, %v1574
          %v1584 = vadd.f32 %v1553, %v1574
          %v1585 = vadd.f32 %v1555, %v1574
          %v1586 = vadd.f32 %v1558, %v1574
          %v1587 = vadd.f32 %v1560, %v1574
          %v1588 = vadd.f32 %v1563, %v1574
          %v1589 = vadd.f32 %v1565, %v1574
          %v1590 = vadd.f32 %v1568, %v1574
          %v1591 = vadd.f32 %v1570, %v1574
          %v1592 = vmax.f32 %v1576, 0.0
          %v1593 = vmax.f32 %v1577, 0.0
          %v1594 = vmax.f32 %v1578, 0.0
          %v1595 = vmax.f32 %v1579, 0.0
          %v1596 = vmax.f32 %v1580, 0.0
          %v1597 = vmax.f32 %v1581, 0.0
          %v1598 = vmax.f32 %v1582, 0.0
          %v1599 = vmax.f32 %v1583, 0.0
          %v1600 = vmax.f32 %v1584, 0.0
          %v1601 = vmax.f32 %v1585, 0.0
          %v1602 = vmax.f32 %v1586, 0.0
          %v1603 = vmax.f32 %v1587, 0.0
          %v1604 = vmax.f32 %v1588, 0.0
          %v1605 = vmax.f32 %v1589, 0.0
          %v1606 = vmax.f32 %v1590, 0.0
          %v1607 = vmax.f32 %v1591, 0.0
          %v1608 = vpack.c.bf16 %v1592, %v1592
          %v1609 = vpack.c.bf16 %v1593, %v1593
          %v1610 = vpack.c.bf16 %v1594, %v1594
          %v1611 = vpack.c.bf16 %v1595, %v1595
          %v1612 = vpack.c.bf16 %v1596, %v1596
          %v1613 = vpack.c.bf16 %v1597, %v1597
          %v1614 = vpack.c.bf16 %v1598, %v1598
          %v1615 = vpack.c.bf16 %v1599, %v1599
          %v1616 = vpack.c.bf16 %v1600, %v1600
          %v1617 = vpack.c.bf16 %v1601, %v1601
          %v1618 = vpack.c.bf16 %v1602, %v1602
          %v1619 = vpack.c.bf16 %v1603, %v1603
          %v1620 = vpack.c.bf16 %v1604, %v1604
          %v1621 = vpack.c.bf16 %v1605, %v1605
          %v1622 = vpack.c.bf16 %v1606, %v1606
          %v1623 = vpack.c.bf16 %v1607, %v1607
          %1624 = vst [vmem:[%s385] sm:$0xf] %v1608
          %1625 = vst [vmem:[%s385 + $0x4] sm:$0xf] %v1609
          %1626 = vst [vmem:[%s385 + $0x8] sm:$0xf] %v1610
          %1627 = vst [vmem:[%s385 + $0xc] sm:$0xf] %v1611
          %1628 = vst [vmem:[%s385 + $0x10] sm:$0xf] %v1612
          %1629 = vst [vmem:[%s385 + $0x14] sm:$0xf] %v1613
          %1630 = vst [vmem:[%s385 + $0x18] sm:$0xf] %v1614
          %1631 = vst [vmem:[%s385 + $0x1c] sm:$0xf] %v1615
          %1632 = vst [vmem:[%s385 + $0x20] sm:$0xf] %v1616
          %1633 = vst [vmem:[%s385 + $0x24] sm:$0xf] %v1617
          %1634 = vst [vmem:[%s385 + $0x28] sm:$0xf] %v1618
          %1635 = vst [vmem:[%s385 + $0x2c] sm:$0xf] %v1619
          %1636 = vst [vmem:[%s385 + $0x30] sm:$0xf] %v1620
          %1637 = vst [vmem:[%s385 + $0x34] sm:$0xf] %v1621
          %1638 = vst [vmem:[%s385 + $0x38] sm:$0xf] %v1622
          %1639 = vst [vmem:[%s385 + $0x3c] sm:$0xf] %v1623
        $region72: #{tpu_custom_call.1} parent=43 // pred_fallthru
          _
        %s1640 = sand.u32 %s188, 1
        %s1641 = scalar_lea.sflag [#allocation6], %s1640
        %s1642 = sand.u32 %s188, 1
        %s1643 = smul.addr %s1642, 64
        %s1644 = scalar_lea.vmem [#allocation13], %s1643
        // Predicated region
        $region73: #{tpu_custom_call.1} parent=43 // pred_check
          %p1645 = pneg %p198
        $region74: #{tpu_custom_call.1} parent=43 // pred_check_branch
          %1647 = sbr.rel (%p1645) target = $region76
        $region75: #{tpu_custom_call.1} parent=43 // pred_region
          %s1648 = smul.u32 16, %s29
          %1650 = vsyncadd %s1641, 0
          %s1651 = smul.addr %s1648, 4
          %s1652 = scalar_lea.hbm %s6, %s1651
          %s1653 = sshll.u32 %s1644, 4
          %s1654 = int_to_ptr.vmem [resolvable:$true] %s1653
          %s1655 = sshll.u32 %s1652, 4
          %s1656 = int_to_ptr.hbm [resolvable:$true] %s1655
          %1661 = dma.vmem_to_hbm [thread:$0]  %s1654, 1024, %s1656, %s1641, 64, 64, 4
        $region76: #{tpu_custom_call.1} parent=43 // pred_fallthru
          _
      $region44: #{tpu_custom_call.1} parent=5 // pred_fallthru
        _
      %p1662 = scmp.le.s32.totalorder 2, %s20
      // Predicated region
      $region77: #{tpu_custom_call.1} parent=5 // pred_check
        %p1663 = pneg %p1662
      $region78: #{tpu_custom_call.1} parent=5 // pred_check_branch
        %1665 = sbr.rel (%p1663) target = $region80
      $region79: #{tpu_custom_call.1} parent=5 // pred_region
        %s1666 = ssub.s32 %s20, 2
        // Predicated region
        $region81: #{tpu_custom_call.1} parent=79 // pred_check
          %p1667 = pneg %p204
        $region82: #{tpu_custom_call.1} parent=79 // pred_check_branch
          %1669 = sbr.rel (%p1667) target = $region84
        $region83: #{tpu_custom_call.1} parent=79 // pred_region
          %s1670 = sand.u32 %s189, 1
          %s1671 = scalar_lea.sflag [#allocation6], %s1670
          %s1672 = sand.u32 %s189, 1
          %s1673 = smul.addr %s1672, 64
          %s1674 = scalar_lea.vmem [#allocation13], %s1673
          %1676 = dma.done %s1671, 1024
        $region84: #{tpu_custom_call.1} parent=79 // pred_fallthru
          _
      $region80: #{tpu_custom_call.1} parent=5 // pred_fallthru
        _
    $region6: #{tpu_custom_call.1} parent=1 // loop_footer
      %s24 = sadd.s32 1, %s20
    $region7: #{tpu_custom_call.1} parent=1 // loop_footer_branch
      %19 = sbr.rel target = $region3
    $region8: #{tpu_custom_call.1} parent=1 // loop_exit
      _
    %1677 = vsyncpa [#allocation5], 1
    %s1678 = scalar_lea.sflag [#allocation5], 1
    %1679 = vsyncpa %s1678, 1
    %1680 = vsyncpa [#allocation8], 1
    %1681 = vsyncpa [#allocation12], 1
    %1682 = vsyncpa [#allocation6], 1
    %s1683 = scalar_lea.sflag [#allocation6], 1
    %1684 = vsyncpa %s1683, 1

</llo_original>
